<compile_context>
chip_gen: v7x
topology: tpu7x:2x2x1
jax: 0.10.0
libtpu: 0.0.40
codegen_flags: <defaults>
</compile_context>

<pallas_src>
import functools
import math

import jax
import jax.numpy as jnp
from jax.experimental import pallas as pl
from jax.experimental.pallas import tpu as pltpu


_VMEM_LIMIT_BYTES = 64 * 1024 * 1024  # explicit scoped-VMEM limit (>= default on all gens)


# ----------------------------------------------------------------------------
# Kernels
# ----------------------------------------------------------------------------
def _make_attention_kernel(n_heads: int, head_dim: int, ln_eps: float):
    scale = 1.0 / math.sqrt(head_dim)

    def kernel(x_ref, mask_ref,
               wq_ref, bq_ref, wk_ref, bk_ref, wv_ref, bv_ref,
               wo_ref, bo_ref, g_ref, beta_ref, o_ref, ctx_sc):
        x = x_ref[0].astype(jnp.float32)            # (S, H) fp32 residual copy
        xb = x.astype(jnp.bfloat16)

        # Full-width QKV projections on the MXU: bf16 operands, fp32 accumulate.
        q = (jnp.dot(xb, wq_ref[...], preferred_element_type=jnp.float32)
             + bq_ref[...]).astype(jnp.bfloat16)
        k = (jnp.dot(xb, wk_ref[...], preferred_element_type=jnp.float32)
             + bk_ref[...]).astype(jnp.bfloat16)
        v = (jnp.dot(xb, wv_ref[...], preferred_element_type=jnp.float32)
             + bv_ref[...]).astype(jnp.bfloat16)

        # additive attention mask over the key axis (BERT convention)
        mask_bias = (1.0 - mask_ref[0].astype(jnp.float32)) * (-10000.0)  # (1, S)

        # Static (unrolled) per-head loop; each head's context retires straight
        # into the (S, H) VMEM scratch slab — no concatenate, no per-head
        # results kept live in vregs.
        for h in range(n_heads):
            sl = slice(h * head_dim, (h + 1) * head_dim)
            q_h = q[:, sl]                          # (S, d) bf16
            k_h = k[:, sl]
            v_h = v[:, sl]
            # scores = q_h @ k_h^T (contract head_dim), fp32 accumulation
            scores = jax.lax.dot_general(
                q_h, k_h, (((1,), (1,)), ((), ())),
                preferred_element_type=jnp.float32) * scale       # (S, S)
            scores = scores + mask_bias
            scores = scores - jnp.max(scores, axis=-1, keepdims=True)
            p = jnp.exp(scores)                                   # un-normalized
            l = jnp.sum(p, axis=-1, keepdims=True)                # (S, 1)
            ctx_h = jnp.dot(p.astype(jnp.bfloat16), v_h,
                            preferred_element_type=jnp.float32)   # (S, d)
            # deferred softmax normalization: (S,d) multiply + EUP reciprocal
            ctx_sc[:, sl] = ctx_h * pl.reciprocal(l, approx=True)

        # output projection + residual + LayerNorm (fp32)
        ctx = ctx_sc[...].astype(jnp.bfloat16)                    # (S, H)
        out = jnp.dot(ctx, wo_ref[...],
                      preferred_element_type=jnp.float32) + bo_ref[...]
        y = out + x
        mean = jnp.mean(y, axis=-1, keepdims=True)
        var = jnp.mean((y - mean) ** 2, axis=-1, keepdims=True)
        y = (y - mean) * jax.lax.rsqrt(var + ln_eps)
        o_ref[0] = (y * g_ref[...] + beta_ref[...]).astype(o_ref.dtype)

    return kernel


def _make_ffn_kernel(ln_eps: float):
    inv_sqrt2 = 1.0 / math.sqrt(2.0)

    def kernel(x_ref, w1_ref, b1_ref, w2_ref, b2_ref, g_ref, beta_ref,
               o_ref, acc_ref):
        ki = pl.program_id(2)

        @pl.when(ki == 0)
        def _():
            acc_ref[...] = jnp.zeros_like(acc_ref)

        x = x_ref[0].astype(jnp.float32)            # (tq, H)
        xb = x.astype(jnp.bfloat16)

        # first matmul over this intermediate chunk: bf16 operands, fp32 acc
        h = jnp.dot(xb, w1_ref[...], preferred_element_type=jnp.float32) + b1_ref[...]
        # exact GELU (matches torch.nn.GELU() default, erf-based) in fp32
        h = 0.5 * h * (1.0 + jax.lax.erf(h * inv_sqrt2))
        # second matmul, accumulated over intermediate chunks in fp32 scratch
        acc_ref[...] += jnp.dot(h.astype(jnp.bfloat16), w2_ref[...],
                                preferred_element_type=jnp.float32)

        @pl.when(ki == pl.num_programs(2) - 1)
        def _():
            y = acc_ref[...] + b2_ref[...] + x      # bias + residual
            mean = jnp.mean(y, axis=-1, keepdims=True)
            var = jnp.mean((y - mean) ** 2, axis=-1, keepdims=True)
            y = (y - mean) * jax.lax.rsqrt(var + ln_eps)
            o_ref[0] = (y * g_ref[...] + beta_ref[...]).astype(o_ref.dtype)

    return kernel


# ----------------------------------------------------------------------------
# Wrapper
# ----------------------------------------------------------------------------
def _tile(dim: int, preferred: int) -> int:
    """Largest clean tile: `preferred` if it divides `dim`, else the full dim."""
    return preferred if (dim % preferred == 0 and dim > preferred) else dim


def bert_layer_forward(x, mask, params, *, n_heads, layer_norm_eps=1e-12):
    """x: (B, S, H) float32, mask: (B, S) {0,1}."""
    B, S, H = x.shape
    head_dim = H // n_heads
    inter = params["w1"].shape[1]
    mask3 = mask.reshape(B, 1, S).astype(jnp.float32)

    # ---- fused multi-head self-attention block ---------------------------
    act_spec = pl.BlockSpec((1, S, H), lambda b: (b, 0, 0))
    mask_spec = pl.BlockSpec((1, 1, S), lambda b: (b, 0, 0))

    def _const_spec(arr):
        nd = arr.ndim
        return pl.BlockSpec(arr.shape, lambda b, _nd=nd: (0,) * _nd)

    attn_args = (params["wq"], params["bq"], params["wk"], params["bk"],
                 params["wv"], params["bv"], params["wo"], params["bo"],
                 params["attn_ln_g"], params["attn_ln_b"])
    attn_kernel = _make_attention_kernel(n_heads, head_dim, layer_norm_eps)
    attn_out = pl.pallas_call(
        attn_kernel,
        out_shape=jax.ShapeDtypeStruct((B, S, H), x.dtype),
        grid_spec=pltpu.PrefetchScalarGridSpec(
            num_scalar_prefetch=0,
            grid=(B,),
            in_specs=[act_spec, mask_spec] + [_const_spec(a) for a in attn_args],
            out_specs=act_spec,
            scratch_shapes=[pltpu.VMEM((S, H), jnp.float32)]),
        compiler_params=pltpu.CompilerParams(
            dimension_semantics=("parallel",),
            vmem_limit_bytes=_VMEM_LIMIT_BYTES),
    )(x, mask3, *attn_args)

    # ---- fused feed-forward (Intermediate) block --------------------------
    # Grid: batch x query-tiles ("parallel" -> megacore) x intermediate chunks
    # ("arbitrary" reduction with fp32 accumulator scratch).
    tq = _tile(S, 256)
    ti = _tile(inter, 512)
    ffn_kernel = _make_ffn_kernel(layer_norm_eps)
    ffn_in_specs = [
        pl.BlockSpec((1, tq, H), lambda b, q, k: (b, q, 0)),   # x (attn out)
        pl.BlockSpec((H, ti),    lambda b, q, k: (0, k)),      # w1 chunk
        pl.BlockSpec((1, ti),    lambda b, q, k: (0, k)),      # b1 chunk
        pl.BlockSpec((ti, H),    lambda b, q, k: (k, 0)),      # w2 chunk
        pl.BlockSpec((1, H),     lambda b, q, k: (0, 0)),      # b2
        pl.BlockSpec((1, H),     lambda b, q, k: (0, 0)),      # ln gamma
        pl.BlockSpec((1, H),     lambda b, q, k: (0, 0)),      # ln beta
    ]
    out = pl.pallas_call(
        ffn_kernel,
        out_shape=jax.ShapeDtypeStruct((B, S, H), x.dtype),
        grid_spec=pltpu.PrefetchScalarGridSpec(
            num_scalar_prefetch=0,
            grid=(B, S // tq, inter // ti),
            in_specs=ffn_in_specs,
            out_specs=pl.BlockSpec((1, tq, H), lambda b, q, k: (b, q, 0)),
            scratch_shapes=[pltpu.VMEM((tq, H), jnp.float32)]),
        compiler_params=pltpu.CompilerParams(
            dimension_semantics=("parallel", "parallel", "arbitrary"),
            vmem_limit_bytes=_VMEM_LIMIT_BYTES),
    )(attn_out, params["w1"], params["b1"], params["w2"], params["b2"],
      params["ffn_ln_g"], params["ffn_ln_b"])
    return out


# ----------------------------------------------------------------------------
# Deterministic parameter init (synthetic; no checkpoint load)
# ----------------------------------------------------------------------------
def init_params(key, hidden, intermediate):
    ks = jax.random.split(key, 6)
    # weights stored bf16 (MXU-native, half the DMA); biases / LN params fp32
    w = lambda k, shp: (0.02 * jax.random.normal(k, shp, jnp.float32)
                        ).astype(jnp.bfloat16)
    return {
        "wq": w(ks[0], (hidden, hidden)), "bq": jnp.zeros((1, hidden), jnp.float32),
        "wk": w(ks[1], (hidden, hidden)), "bk": jnp.zeros((1, hidden), jnp.float32),
        "wv": w(ks[2], (hidden, hidden)), "bv": jnp.zeros((1, hidden), jnp.float32),
        "wo": w(ks[3], (hidden, hidden)), "bo": jnp.zeros((1, hidden), jnp.float32),
        "attn_ln_g": jnp.ones((1, hidden), jnp.float32),
        "attn_ln_b": jnp.zeros((1, hidden), jnp.float32),
        "w1": w(ks[4], (hidden, intermediate)),
        "b1": jnp.zeros((1, intermediate), jnp.float32),
        "w2": w(ks[5], (intermediate, hidden)),
        "b2": jnp.zeros((1, hidden), jnp.float32),
        "ffn_ln_g": jnp.ones((1, hidden), jnp.float32),
        "ffn_ln_b": jnp.zeros((1, hidden), jnp.float32),
    }


# ----------------------------------------------------------------------------
# Pure-JAX reference (fp32 math on the same bf16-stored weights)
# ----------------------------------------------------------------------------
def reference_forward(x, mask, params, *, n_heads, layer_norm_eps=1e-12):
    B, S, H = x.shape
    d = H // n_heads

    def ln(y, g, b):
        m = jnp.mean(y, -1, keepdims=True)
        v = jnp.mean((y - m) ** 2, -1, keepdims=True)
        return (y - m) * jax.lax.rsqrt(v + layer_norm_eps) * g + b

    f32 = lambda a: a.astype(jnp.float32)
    q = x @ f32(params["wq"]) + params["bq"]
    k = x @ f32(params["wk"]) + params["bk"]
    v = x @ f32(params["wv"]) + params["bv"]
    q = q.reshape(B, S, n_heads, d).transpose(0, 2, 1, 3)
    k = k.reshape(B, S, n_heads, d).transpose(0, 2, 1, 3)
    v = v.reshape(B, S, n_heads, d).transpose(0, 2, 1, 3)
    scores = jnp.einsum("bhqd,bhkd->bhqk", q, k) / math.sqrt(d)
    scores = scores + ((1.0 - mask[:, None, None, :]) * -10000.0)
    p = jax.nn.softmax(scores, axis=-1)
    ctx = jnp.einsum("bhqk,bhkd->bhqd", p, v).transpose(0, 2, 1, 3).reshape(B, S, H)
    attn = ln(ctx @ f32(params["wo"]) + params["bo"] + x,
              params["attn_ln_g"], params["attn_ln_b"])
    h = attn @ f32(params["w1"]) + params["b1"]
    h = 0.5 * h * (1.0 + jax.lax.erf(h / math.sqrt(2.0)))
    y = h @ f32(params["w2"]) + params["b2"] + attn
    return ln(y, params["ffn_ln_g"], params["ffn_ln_b"])


if __name__ == "__main__":
    B, S, H, NH, I = 2, 8, 32, 4, 64
    key = jax.random.PRNGKey(0)
    k_x, k_p = jax.random.split(key)

    x = jax.random.normal(k_x, (B, S, H), jnp.float32)
    # mask: last two positions of the second example are padding
    mask = jnp.ones((B, S), jnp.float32).at[1, S - 2:].set(0.0)
    params = init_params(k_p, H, I)

    out = bert_layer_forward(x, mask, params, n_heads=NH, layer_norm_eps=1e-12)
    out = jax.block_until_ready(out)

    ref = reference_forward(x, mask, params, n_heads=NH, layer_norm_eps=1e-12)
    assert out.shape == (B, S, H)
    # kernel uses bf16 matmul operands (fp32 accumulation); loose-ish tolerance
    assert jnp.allclose(out, ref, rtol=1e-2, atol=1e-2), "mismatch vs reference"

    print("KERNEL_OK")
</pallas_src>

<mosaic_0001>
module attributes {stable_mosaic.version = 11 : i64} {
  func.func @kernel(%arg0: i32, %arg1: memref<1x8x32xf32, #tpu.memory_space<vmem>>, %arg2: memref<1x1x8xf32, #tpu.memory_space<vmem>>, %arg3: memref<32x32xbf16, #tpu.memory_space<vmem>>, %arg4: memref<1x32xf32, #tpu.memory_space<vmem>>, %arg5: memref<32x32xbf16, #tpu.memory_space<vmem>>, %arg6: memref<1x32xf32, #tpu.memory_space<vmem>>, %arg7: memref<32x32xbf16, #tpu.memory_space<vmem>>, %arg8: memref<1x32xf32, #tpu.memory_space<vmem>>, %arg9: memref<32x32xbf16, #tpu.memory_space<vmem>>, %arg10: memref<1x32xf32, #tpu.memory_space<vmem>>, %arg11: memref<1x32xf32, #tpu.memory_space<vmem>>, %arg12: memref<1x32xf32, #tpu.memory_space<vmem>>, %arg13: memref<1x8x32xf32, #tpu.memory_space<vmem>>, %arg14: memref<8x32xf32, #tpu.memory_space<vmem>>) attributes {dimension_semantics = [#tpu.dimension_semantics<parallel>], iteration_bounds = array<i64: 2>, scalar_prefetch = 0 : i64, scratch_operands = 1 : i64, tpu.core_type = #tpu.core_type<tc>, window_params = [{transform_indices = @transform_0, window_bounds = array<i64: 1, 8, 32>}, {transform_indices = @transform_1, window_bounds = array<i64: 1, 1, 8>}, {pipeline_mode = #tpu.pipeline_mode<synchronous>, transform_indices = @transform_2, window_bounds = array<i64: 32, 32>}, {pipeline_mode = #tpu.pipeline_mode<synchronous>, transform_indices = @transform_3, window_bounds = array<i64: 1, 32>}, {pipeline_mode = #tpu.pipeline_mode<synchronous>, transform_indices = @transform_4, window_bounds = array<i64: 32, 32>}, {pipeline_mode = #tpu.pipeline_mode<synchronous>, transform_indices = @transform_5, window_bounds = array<i64: 1, 32>}, {pipeline_mode = #tpu.pipeline_mode<synchronous>, transform_indices = @transform_6, window_bounds = array<i64: 32, 32>}, {pipeline_mode = #tpu.pipeline_mode<synchronous>, transform_indices = @transform_7, window_bounds = array<i64: 1, 32>}, {pipeline_mode = #tpu.pipeline_mode<synchronous>, transform_indices = @transform_8, window_bounds = array<i64: 32, 32>}, {pipeline_mode = #tpu.pipeline_mode<synchronous>, transform_indices = @transform_9, window_bounds = array<i64: 1, 32>}, {pipeline_mode = #tpu.pipeline_mode<synchronous>, transform_indices = @transform_10, window_bounds = array<i64: 1, 32>}, {pipeline_mode = #tpu.pipeline_mode<synchronous>, transform_indices = @transform_11, window_bounds = array<i64: 1, 32>}, {transform_indices = @transform_12, window_bounds = array<i64: 1, 8, 32>}]} {
    %c0 = arith.constant 0 : index
    %c0_0 = arith.constant 0 : index
    %c0_1 = arith.constant 0 : index
    %0 = vector.load %arg1[%c0, %c0_0, %c0_1] : memref<1x8x32xf32, #tpu.memory_space<vmem>>, vector<1x8x32xf32>
    %1 = vector.shape_cast %0 : vector<1x8x32xf32> to vector<8x32xf32>
    %2 = arith.truncf %1 : vector<8x32xf32> to vector<8x32xbf16>
    %c0_2 = arith.constant 0 : index
    %c0_3 = arith.constant 0 : index
    %3 = vector.load %arg3[%c0_2, %c0_3] : memref<32x32xbf16, #tpu.memory_space<vmem>>, vector<32x32xbf16>
    %cst = arith.constant dense<0.000000e+00> : vector<8x32xf32>
    %4 = tpu.matmul %2, %3, %cst {dimension_numbers = #tpu.dot_dimension_numbers<[1], [0], [0], [1], [0, 0, 1, 1], [], []>} : vector<8x32xbf16>, vector<32x32xbf16>, vector<8x32xf32> -> vector<8x32xf32>
    %c0_4 = arith.constant 0 : index
    %c0_5 = arith.constant 0 : index
    %5 = vector.load %arg4[%c0_4, %c0_5] : memref<1x32xf32, #tpu.memory_space<vmem>>, vector<1x32xf32>
    %6 = vector.broadcast %5 : vector<1x32xf32> to vector<8x32xf32>
    %7 = arith.addf %4, %6 : vector<8x32xf32>
    %8 = arith.truncf %7 : vector<8x32xf32> to vector<8x32xbf16>
    %c0_6 = arith.constant 0 : index
    %c0_7 = arith.constant 0 : index
    %9 = vector.load %arg5[%c0_6, %c0_7] : memref<32x32xbf16, #tpu.memory_space<vmem>>, vector<32x32xbf16>
    %cst_8 = arith.constant dense<0.000000e+00> : vector<8x32xf32>
    %10 = tpu.matmul %2, %9, %cst_8 {dimension_numbers = #tpu.dot_dimension_numbers<[1], [0], [0], [1], [0, 0, 1, 1], [], []>} : vector<8x32xbf16>, vector<32x32xbf16>, vector<8x32xf32> -> vector<8x32xf32>
    %c0_9 = arith.constant 0 : index
    %c0_10 = arith.constant 0 : index
    %11 = vector.load %arg6[%c0_9, %c0_10] : memref<1x32xf32, #tpu.memory_space<vmem>>, vector<1x32xf32>
    %12 = vector.broadcast %11 : vector<1x32xf32> to vector<8x32xf32>
    %13 = arith.addf %10, %12 : vector<8x32xf32>
    %14 = arith.truncf %13 : vector<8x32xf32> to vector<8x32xbf16>
    %c0_11 = arith.constant 0 : index
    %c0_12 = arith.constant 0 : index
    %15 = vector.load %arg7[%c0_11, %c0_12] : memref<32x32xbf16, #tpu.memory_space<vmem>>, vector<32x32xbf16>
    %cst_13 = arith.constant dense<0.000000e+00> : vector<8x32xf32>
    %16 = tpu.matmul %2, %15, %cst_13 {dimension_numbers = #tpu.dot_dimension_numbers<[1], [0], [0], [1], [0, 0, 1, 1], [], []>} : vector<8x32xbf16>, vector<32x32xbf16>, vector<8x32xf32> -> vector<8x32xf32>
    %c0_14 = arith.constant 0 : index
    %c0_15 = arith.constant 0 : index
    %17 = vector.load %arg8[%c0_14, %c0_15] : memref<1x32xf32, #tpu.memory_space<vmem>>, vector<1x32xf32>
    %18 = vector.broadcast %17 : vector<1x32xf32> to vector<8x32xf32>
    %19 = arith.addf %16, %18 : vector<8x32xf32>
    %20 = arith.truncf %19 : vector<8x32xf32> to vector<8x32xbf16>
    %c0_16 = arith.constant 0 : index
    %c0_17 = arith.constant 0 : index
    %c0_18 = arith.constant 0 : index
    %21 = vector.load %arg2[%c0_16, %c0_17, %c0_18] : memref<1x1x8xf32, #tpu.memory_space<vmem>>, vector<1x1x8xf32>
    %22 = vector.shape_cast %21 : vector<1x1x8xf32> to vector<1x8xf32>
    %cst_19 = arith.constant 1.000000e+00 : f32
    %23 = vector.broadcast %cst_19 : f32 to vector<1x8xf32>
    %24 = arith.subf %23, %22 : vector<1x8xf32>
    %cst_20 = arith.constant -1.000000e+04 : f32
    %25 = vector.broadcast %cst_20 : f32 to vector<1x8xf32>
    %26 = arith.mulf %24, %25 : vector<1x8xf32>
    %27 = vector.extract_strided_slice %8 {offsets = [0, 0], sizes = [8, 8], strides = [1, 1]} : vector<8x32xbf16> to vector<8x8xbf16>
    %28 = vector.extract_strided_slice %14 {offsets = [0, 0], sizes = [8, 8], strides = [1, 1]} : vector<8x32xbf16> to vector<8x8xbf16>
    %29 = vector.extract_strided_slice %20 {offsets = [0, 0], sizes = [8, 8], strides = [1, 1]} : vector<8x32xbf16> to vector<8x8xbf16>
    %cst_21 = arith.constant dense<0.000000e+00> : vector<8x8xf32>
    %30 = tpu.matmul %27, %28, %cst_21 {dimension_numbers = #tpu.dot_dimension_numbers<[1], [1], [0], [0], [0, 0, 1, 0], [], []>} : vector<8x8xbf16>, vector<8x8xbf16>, vector<8x8xf32> -> vector<8x8xf32>
    %cst_22 = arith.constant 0.353553385 : f32
    %31 = vector.broadcast %cst_22 : f32 to vector<8x8xf32>
    %32 = arith.mulf %30, %31 : vector<8x8xf32>
    %33 = vector.broadcast %26 : vector<1x8xf32> to vector<8x8xf32>
    %34 = arith.addf %32, %33 : vector<8x8xf32>
    %cst_23 = arith.constant dense<0xFF800000> : vector<8xf32>
    %35 = vector.multi_reduction <maximumf>, %34, %cst_23 [1] : vector<8x8xf32> to vector<8xf32>
    %36 = vector.shape_cast %35 : vector<8xf32> to vector<8x1xf32>
    %37 = vector.broadcast %36 : vector<8x1xf32> to vector<8x8xf32>
    %38 = arith.subf %34, %37 : vector<8x8xf32>
    %39 = math.exp %38 : vector<8x8xf32>
    %cst_24 = arith.constant dense<0.000000e+00> : vector<8xf32>
    %40 = vector.multi_reduction <add>, %39, %cst_24 [1] : vector<8x8xf32> to vector<8xf32>
    %41 = vector.shape_cast %40 : vector<8xf32> to vector<8x1xf32>
    %42 = arith.truncf %39 : vector<8x8xf32> to vector<8x8xbf16>
    %cst_25 = arith.constant dense<0.000000e+00> : vector<8x8xf32>
    %43 = tpu.matmul %42, %29, %cst_25 {dimension_numbers = #tpu.dot_dimension_numbers<[1], [0], [0], [1], [0, 0, 1, 1], [], []>} : vector<8x8xbf16>, vector<8x8xbf16>, vector<8x8xf32> -> vector<8x8xf32>
    %44 = tpu.reciprocal %41 {approx = true} : vector<8x1xf32> -> vector<8x1xf32>
    %45 = vector.broadcast %44 : vector<8x1xf32> to vector<8x8xf32>
    %46 = arith.mulf %43, %45 : vector<8x8xf32>
    %c0_26 = arith.constant 0 : index
    %c0_27 = arith.constant 0 : index
    %47 = vector.load %arg14[%c0_26, %c0_27] : memref<8x32xf32, #tpu.memory_space<vmem>>, vector<8x8xf32>
    tpu.vector_store %arg14[%c0_26, %c0_27], %46 {strides = array<i32>} : memref<8x32xf32, #tpu.memory_space<vmem>>, vector<8x8xf32>,
    %48 = vector.extract_strided_slice %8 {offsets = [0, 8], sizes = [8, 8], strides = [1, 1]} : vector<8x32xbf16> to vector<8x8xbf16>
    %49 = vector.extract_strided_slice %14 {offsets = [0, 8], sizes = [8, 8], strides = [1, 1]} : vector<8x32xbf16> to vector<8x8xbf16>
    %50 = vector.extract_strided_slice %20 {offsets = [0, 8], sizes = [8, 8], strides = [1, 1]} : vector<8x32xbf16> to vector<8x8xbf16>
    %cst_28 = arith.constant dense<0.000000e+00> : vector<8x8xf32>
    %51 = tpu.matmul %48, %49, %cst_28 {dimension_numbers = #tpu.dot_dimension_numbers<[1], [1], [0], [0], [0, 0, 1, 0], [], []>} : vector<8x8xbf16>, vector<8x8xbf16>, vector<8x8xf32> -> vector<8x8xf32>
    %cst_29 = arith.constant 0.353553385 : f32
    %52 = vector.broadcast %cst_29 : f32 to vector<8x8xf32>
    %53 = arith.mulf %51, %52 : vector<8x8xf32>
    %54 = vector.broadcast %26 : vector<1x8xf32> to vector<8x8xf32>
    %55 = arith.addf %53, %54 : vector<8x8xf32>
    %cst_30 = arith.constant dense<0xFF800000> : vector<8xf32>
    %56 = vector.multi_reduction <maximumf>, %55, %cst_30 [1] : vector<8x8xf32> to vector<8xf32>
    %57 = vector.shape_cast %56 : vector<8xf32> to vector<8x1xf32>
    %58 = vector.broadcast %57 : vector<8x1xf32> to vector<8x8xf32>
    %59 = arith.subf %55, %58 : vector<8x8xf32>
    %60 = math.exp %59 : vector<8x8xf32>
    %cst_31 = arith.constant dense<0.000000e+00> : vector<8xf32>
    %61 = vector.multi_reduction <add>, %60, %cst_31 [1] : vector<8x8xf32> to vector<8xf32>
    %62 = vector.shape_cast %61 : vector<8xf32> to vector<8x1xf32>
    %63 = arith.truncf %60 : vector<8x8xf32> to vector<8x8xbf16>
    %cst_32 = arith.constant dense<0.000000e+00> : vector<8x8xf32>
    %64 = tpu.matmul %63, %50, %cst_32 {dimension_numbers = #tpu.dot_dimension_numbers<[1], [0], [0], [1], [0, 0, 1, 1], [], []>} : vector<8x8xbf16>, vector<8x8xbf16>, vector<8x8xf32> -> vector<8x8xf32>
    %65 = tpu.reciprocal %62 {approx = true} : vector<8x1xf32> -> vector<8x1xf32>
    %66 = vector.broadcast %65 : vector<8x1xf32> to vector<8x8xf32>
    %67 = arith.mulf %64, %66 : vector<8x8xf32>
    %c0_33 = arith.constant 0 : index
    %c8 = arith.constant 8 : index
    %68 = vector.load %arg14[%c0_33, %c8] : memref<8x32xf32, #tpu.memory_space<vmem>>, vector<8x8xf32>
    tpu.vector_store %arg14[%c0_33, %c8], %67 {strides = array<i32>} : memref<8x32xf32, #tpu.memory_space<vmem>>, vector<8x8xf32>,
    %69 = vector.extract_strided_slice %8 {offsets = [0, 16], sizes = [8, 8], strides = [1, 1]} : vector<8x32xbf16> to vector<8x8xbf16>
    %70 = vector.extract_strided_slice %14 {offsets = [0, 16], sizes = [8, 8], strides = [1, 1]} : vector<8x32xbf16> to vector<8x8xbf16>
    %71 = vector.extract_strided_slice %20 {offsets = [0, 16], sizes = [8, 8], strides = [1, 1]} : vector<8x32xbf16> to vector<8x8xbf16>
    %cst_34 = arith.constant dense<0.000000e+00> : vector<8x8xf32>
    %72 = tpu.matmul %69, %70, %cst_34 {dimension_numbers = #tpu.dot_dimension_numbers<[1], [1], [0], [0], [0, 0, 1, 0], [], []>} : vector<8x8xbf16>, vector<8x8xbf16>, vector<8x8xf32> -> vector<8x8xf32>
    %cst_35 = arith.constant 0.353553385 : f32
    %73 = vector.broadcast %cst_35 : f32 to vector<8x8xf32>
    %74 = arith.mulf %72, %73 : vector<8x8xf32>
    %75 = vector.broadcast %26 : vector<1x8xf32> to vector<8x8xf32>
    %76 = arith.addf %74, %75 : vector<8x8xf32>
    %cst_36 = arith.constant dense<0xFF800000> : vector<8xf32>
    %77 = vector.multi_reduction <maximumf>, %76, %cst_36 [1] : vector<8x8xf32> to vector<8xf32>
    %78 = vector.shape_cast %77 : vector<8xf32> to vector<8x1xf32>
    %79 = vector.broadcast %78 : vector<8x1xf32> to vector<8x8xf32>
    %80 = arith.subf %76, %79 : vector<8x8xf32>
    %81 = math.exp %80 : vector<8x8xf32>
    %cst_37 = arith.constant dense<0.000000e+00> : vector<8xf32>
    %82 = vector.multi_reduction <add>, %81, %cst_37 [1] : vector<8x8xf32> to vector<8xf32>
    %83 = vector.shape_cast %82 : vector<8xf32> to vector<8x1xf32>
    %84 = arith.truncf %81 : vector<8x8xf32> to vector<8x8xbf16>
    %cst_38 = arith.constant dense<0.000000e+00> : vector<8x8xf32>
    %85 = tpu.matmul %84, %71, %cst_38 {dimension_numbers = #tpu.dot_dimension_numbers<[1], [0], [0], [1], [0, 0, 1, 1], [], []>} : vector<8x8xbf16>, vector<8x8xbf16>, vector<8x8xf32> -> vector<8x8xf32>
    %86 = tpu.reciprocal %83 {approx = true} : vector<8x1xf32> -> vector<8x1xf32>
    %87 = vector.broadcast %86 : vector<8x1xf32> to vector<8x8xf32>
    %88 = arith.mulf %85, %87 : vector<8x8xf32>
    %c0_39 = arith.constant 0 : index
    %c16 = arith.constant 16 : index
    %89 = vector.load %arg14[%c0_39, %c16] : memref<8x32xf32, #tpu.memory_space<vmem>>, vector<8x8xf32>
    tpu.vector_store %arg14[%c0_39, %c16], %88 {strides = array<i32>} : memref<8x32xf32, #tpu.memory_space<vmem>>, vector<8x8xf32>,
    %90 = vector.extract_strided_slice %8 {offsets = [0, 24], sizes = [8, 8], strides = [1, 1]} : vector<8x32xbf16> to vector<8x8xbf16>
    %91 = vector.extract_strided_slice %14 {offsets = [0, 24], sizes = [8, 8], strides = [1, 1]} : vector<8x32xbf16> to vector<8x8xbf16>
    %92 = vector.extract_strided_slice %20 {offsets = [0, 24], sizes = [8, 8], strides = [1, 1]} : vector<8x32xbf16> to vector<8x8xbf16>
    %cst_40 = arith.constant dense<0.000000e+00> : vector<8x8xf32>
    %93 = tpu.matmul %90, %91, %cst_40 {dimension_numbers = #tpu.dot_dimension_numbers<[1], [1], [0], [0], [0, 0, 1, 0], [], []>} : vector<8x8xbf16>, vector<8x8xbf16>, vector<8x8xf32> -> vector<8x8xf32>
    %cst_41 = arith.constant 0.353553385 : f32
    %94 = vector.broadcast %cst_41 : f32 to vector<8x8xf32>
    %95 = arith.mulf %93, %94 : vector<8x8xf32>
    %96 = vector.broadcast %26 : vector<1x8xf32> to vector<8x8xf32>
    %97 = arith.addf %95, %96 : vector<8x8xf32>
    %cst_42 = arith.constant dense<0xFF800000> : vector<8xf32>
    %98 = vector.multi_reduction <maximumf>, %97, %cst_42 [1] : vector<8x8xf32> to vector<8xf32>
    %99 = vector.shape_cast %98 : vector<8xf32> to vector<8x1xf32>
    %100 = vector.broadcast %99 : vector<8x1xf32> to vector<8x8xf32>
    %101 = arith.subf %97, %100 : vector<8x8xf32>
    %102 = math.exp %101 : vector<8x8xf32>
    %cst_43 = arith.constant dense<0.000000e+00> : vector<8xf32>
    %103 = vector.multi_reduction <add>, %102, %cst_43 [1] : vector<8x8xf32> to vector<8xf32>
    %104 = vector.shape_cast %103 : vector<8xf32> to vector<8x1xf32>
    %105 = arith.truncf %102 : vector<8x8xf32> to vector<8x8xbf16>
    %cst_44 = arith.constant dense<0.000000e+00> : vector<8x8xf32>
    %106 = tpu.matmul %105, %92, %cst_44 {dimension_numbers = #tpu.dot_dimension_numbers<[1], [0], [0], [1], [0, 0, 1, 1], [], []>} : vector<8x8xbf16>, vector<8x8xbf16>, vector<8x8xf32> -> vector<8x8xf32>
    %107 = tpu.reciprocal %104 {approx = true} : vector<8x1xf32> -> vector<8x1xf32>
    %108 = vector.broadcast %107 : vector<8x1xf32> to vector<8x8xf32>
    %109 = arith.mulf %106, %108 : vector<8x8xf32>
    %c0_45 = arith.constant 0 : index
    %c24 = arith.constant 24 : index
    %110 = vector.load %arg14[%c0_45, %c24] : memref<8x32xf32, #tpu.memory_space<vmem>>, vector<8x8xf32>
    tpu.vector_store %arg14[%c0_45, %c24], %109 {strides = array<i32>} : memref<8x32xf32, #tpu.memory_space<vmem>>, vector<8x8xf32>,
    %c0_46 = arith.constant 0 : index
    %c0_47 = arith.constant 0 : index
    %111 = vector.load %arg14[%c0_46, %c0_47] : memref<8x32xf32, #tpu.memory_space<vmem>>, vector<8x32xf32>
    %112 = arith.truncf %111 : vector<8x32xf32> to vector<8x32xbf16>
    %c0_48 = arith.constant 0 : index
    %c0_49 = arith.constant 0 : index
    %113 = vector.load %arg9[%c0_48, %c0_49] : memref<32x32xbf16, #tpu.memory_space<vmem>>, vector<32x32xbf16>
    %cst_50 = arith.constant dense<0.000000e+00> : vector<8x32xf32>
    %114 = tpu.matmul %112, %113, %cst_50 {dimension_numbers = #tpu.dot_dimension_numbers<[1], [0], [0], [1], [0, 0, 1, 1], [], []>} : vector<8x32xbf16>, vector<32x32xbf16>, vector<8x32xf32> -> vector<8x32xf32>
    %c0_51 = arith.constant 0 : index
    %c0_52 = arith.constant 0 : index
    %115 = vector.load %arg10[%c0_51, %c0_52] : memref<1x32xf32, #tpu.memory_space<vmem>>, vector<1x32xf32>
    %116 = vector.broadcast %115 : vector<1x32xf32> to vector<8x32xf32>
    %117 = arith.addf %114, %116 : vector<8x32xf32>
    %118 = arith.addf %117, %1 : vector<8x32xf32>
    %cst_53 = arith.constant dense<0.000000e+00> : vector<8xf32>
    %119 = vector.multi_reduction <add>, %118, %cst_53 [1] : vector<8x32xf32> to vector<8xf32>
    %120 = vector.shape_cast %119 : vector<8xf32> to vector<8x1xf32>
    %cst_54 = arith.constant 3.200000e+01 : f32
    %121 = vector.broadcast %cst_54 : f32 to vector<8x1xf32>
    %122 = arith.divf %120, %121 : vector<8x1xf32>
    %123 = vector.broadcast %122 : vector<8x1xf32> to vector<8x32xf32>
    %124 = arith.subf %118, %123 : vector<8x32xf32>
    %125 = arith.mulf %124, %124 : vector<8x32xf32>
    %cst_55 = arith.constant dense<0.000000e+00> : vector<8xf32>
    %126 = vector.multi_reduction <add>, %125, %cst_55 [1] : vector<8x32xf32> to vector<8xf32>
    %127 = vector.shape_cast %126 : vector<8xf32> to vector<8x1xf32>
    %cst_56 = arith.constant 3.200000e+01 : f32
    %128 = vector.broadcast %cst_56 : f32 to vector<8x1xf32>
    %129 = arith.divf %127, %128 : vector<8x1xf32>
    %130 = vector.broadcast %122 : vector<8x1xf32> to vector<8x32xf32>
    %131 = arith.subf %118, %130 : vector<8x32xf32>
    %cst_57 = arith.constant 9.99999996E-13 : f32
    %132 = vector.broadcast %cst_57 : f32 to vector<8x1xf32>
    %133 = arith.addf %129, %132 : vector<8x1xf32>
    %134 = math.rsqrt %133 : vector<8x1xf32>
    %135 = vector.broadcast %134 : vector<8x1xf32> to vector<8x32xf32>
    %136 = arith.mulf %131, %135 : vector<8x32xf32>
    %c0_58 = arith.constant 0 : index
    %c0_59 = arith.constant 0 : index
    %137 = vector.load %arg11[%c0_58, %c0_59] : memref<1x32xf32, #tpu.memory_space<vmem>>, vector<1x32xf32>
    %138 = vector.broadcast %137 : vector<1x32xf32> to vector<8x32xf32>
    %139 = arith.mulf %136, %138 : vector<8x32xf32>
    %c0_60 = arith.constant 0 : index
    %c0_61 = arith.constant 0 : index
    %140 = vector.load %arg12[%c0_60, %c0_61] : memref<1x32xf32, #tpu.memory_space<vmem>>, vector<1x32xf32>
    %141 = vector.broadcast %140 : vector<1x32xf32> to vector<8x32xf32>
    %142 = arith.addf %139, %141 : vector<8x32xf32>
    %c0_62 = arith.constant 0 : index
    %c0_63 = arith.constant 0 : index
    %c0_64 = arith.constant 0 : index
    %143 = vector.load %arg13[%c0_62, %c0_63, %c0_64] : memref<1x8x32xf32, #tpu.memory_space<vmem>>, vector<1x8x32xf32>
    %144 = vector.shape_cast %143 : vector<1x8x32xf32> to vector<8x32xf32>
    %145 = vector.shape_cast %142 : vector<8x32xf32> to vector<1x8x32xf32>
    tpu.vector_store %arg13[%c0_62, %c0_63, %c0_64], %145 {strides = array<i32>} : memref<1x8x32xf32, #tpu.memory_space<vmem>>, vector<1x8x32xf32>,
    return
  }
  func.func @transform_0(%arg0: i32) -> (i32, i32, i32) {
    %c0_i32 = arith.constant 0 : i32
    %c0_i32_0 = arith.constant 0 : i32
    %c0_i32_1 = arith.constant 0 : i32
    return %arg0, %c0_i32, %c0_i32_0 : i32, i32, i32
  }
  func.func @transform_1(%arg0: i32) -> (i32, i32, i32) {
    %c0_i32 = arith.constant 0 : i32
    %c0_i32_0 = arith.constant 0 : i32
    %c0_i32_1 = arith.constant 0 : i32
    return %arg0, %c0_i32, %c0_i32_0 : i32, i32, i32
  }
  func.func @transform_2(%arg0: i32) -> (i32, i32) {
    %c0_i32 = arith.constant 0 : i32
    %c0_i32_0 = arith.constant 0 : i32
    %c0_i32_1 = arith.constant 0 : i32
    return %c0_i32, %c0_i32_0 : i32, i32
  }
  func.func @transform_3(%arg0: i32) -> (i32, i32) {
    %c0_i32 = arith.constant 0 : i32
    %c0_i32_0 = arith.constant 0 : i32
    %c0_i32_1 = arith.constant 0 : i32
    return %c0_i32, %c0_i32_0 : i32, i32
  }
  func.func @transform_4(%arg0: i32) -> (i32, i32) {
    %c0_i32 = arith.constant 0 : i32
    %c0_i32_0 = arith.constant 0 : i32
    %c0_i32_1 = arith.constant 0 : i32
    return %c0_i32, %c0_i32_0 : i32, i32
  }
  func.func @transform_5(%arg0: i32) -> (i32, i32) {
    %c0_i32 = arith.constant 0 : i32
    %c0_i32_0 = arith.constant 0 : i32
    %c0_i32_1 = arith.constant 0 : i32
    return %c0_i32, %c0_i32_0 : i32, i32
  }
  func.func @transform_6(%arg0: i32) -> (i32, i32) {
    %c0_i32 = arith.constant 0 : i32
    %c0_i32_0 = arith.constant 0 : i32
    %c0_i32_1 = arith.constant 0 : i32
    return %c0_i32, %c0_i32_0 : i32, i32
  }
  func.func @transform_7(%arg0: i32) -> (i32, i32) {
    %c0_i32 = arith.constant 0 : i32
    %c0_i32_0 = arith.constant 0 : i32
    %c0_i32_1 = arith.constant 0 : i32
    return %c0_i32, %c0_i32_0 : i32, i32
  }
  func.func @transform_8(%arg0: i32) -> (i32, i32) {
    %c0_i32 = arith.constant 0 : i32
    %c0_i32_0 = arith.constant 0 : i32
    %c0_i32_1 = arith.constant 0 : i32
    return %c0_i32, %c0_i32_0 : i32, i32
  }
  func.func @transform_9(%arg0: i32) -> (i32, i32) {
    %c0_i32 = arith.constant 0 : i32
    %c0_i32_0 = arith.constant 0 : i32
    %c0_i32_1 = arith.constant 0 : i32
    return %c0_i32, %c0_i32_0 : i32, i32
  }
  func.func @transform_10(%arg0: i32) -> (i32, i32) {
    %c0_i32 = arith.constant 0 : i32
    %c0_i32_0 = arith.constant 0 : i32
    %c0_i32_1 = arith.constant 0 : i32
    return %c0_i32, %c0_i32_0 : i32, i32
  }
  func.func @transform_11(%arg0: i32) -> (i32, i32) {
    %c0_i32 = arith.constant 0 : i32
    %c0_i32_0 = arith.constant 0 : i32
    %c0_i32_1 = arith.constant 0 : i32
    return %c0_i32, %c0_i32_0 : i32, i32
  }
  func.func @transform_12(%arg0: i32) -> (i32, i32, i32) {
    %c0_i32 = arith.constant 0 : i32
    %c0_i32_0 = arith.constant 0 : i32
    %c0_i32_1 = arith.constant 0 : i32
    return %arg0, %c0_i32, %c0_i32_0 : i32, i32, i32
  }
}

</mosaic_0001>

<llo_original>
// kernel: tpu_custom_call.1
$region0: #{tpu_custom_call.1}
  #allocation0 [shape = 'u32[]', space=smem, size = 0x4, offset = 0x4, fixed_abs, tag = 'smem constant byte address 0x4 - core index']
  #allocation1 [shape = 'u32[144,128]{1,0:T(1,128)}', space=vmem, size = 0x12000, scoped, tag = 'internal scratch']
  #allocation2 [shape = 'f32[8,32]{1,0:T(8,128)}', space=vmem, size = 0x1000, scoped, tag = 'scratch operand']
  %s0 = inlined_call_operand.hbm [shape: f32[2,8,32], index: 0, kind: input, shape index: {}]
  %s1 = inlined_call_operand.hbm [shape: f32[2,1,8], index: 1, kind: input, shape index: {}]
  %s2 = inlined_call_operand.hbm [shape: bf16[32,32], index: 2, kind: input, shape index: {}]
  %s3 = inlined_call_operand.hbm [shape: f32[1,32], index: 3, kind: input, shape index: {}]
  %s4 = inlined_call_operand.hbm [shape: bf16[32,32], index: 4, kind: input, shape index: {}]
  %s5 = inlined_call_operand.hbm [shape: f32[1,32], index: 5, kind: input, shape index: {}]
  %s6 = inlined_call_operand.hbm [shape: bf16[32,32], index: 6, kind: input, shape index: {}]
  %s7 = inlined_call_operand.hbm [shape: f32[1,32], index: 7, kind: input, shape index: {}]
  %s8 = inlined_call_operand.hbm [shape: bf16[32,32], index: 8, kind: input, shape index: {}]
  %s9 = inlined_call_operand.hbm [shape: f32[1,32], index: 9, kind: input, shape index: {}]
  %s10 = inlined_call_operand.hbm [shape: f32[1,32], index: 10, kind: input, shape index: {}]
  %s11 = inlined_call_operand.hbm [shape: f32[1,32], index: 11, kind: input, shape index: {}]
  %s12 = inlined_call_operand.hbm [shape: f32[2,8,32], index: 12, kind: output, shape index: {}]
  %s13 = sld [smem:[#allocation0]]
  $region129: #{tpu_custom_call.1} parent=0
    _
  %s15 = ssub.s32 1, %s13
  %s16 = scalar_select 0, %s15, %s13
  $region1: #{tpu_custom_call.1} parent=0
    #allocation3 [shape = 'u8[8192]{0}', space=vmem, size = 0x2000, scoped, tag = 'input window, operand 0']
    #allocation4 [shape = 's32[2]{0}', space=sflag, size = 0x8, scoped, tag = 'scoped memory for tpu_custom_call.1']
    #allocation5 [shape = 's32[2]{0}', space=sflag, size = 0x8, scoped, tag = 'scoped memory for tpu_custom_call.1']
    #allocation6 [shape = 'u8[1024]{0}', space=vmem, size = 0x400, scoped, tag = 'input window, operand 1']
    #allocation7 [shape = 's32[2]{0}', space=sflag, size = 0x8, scoped, tag = 'scoped memory for tpu_custom_call.1']
    #allocation8 [shape = 'u8[8192]{0}', space=vmem, size = 0x2000, scoped, tag = 'input window, operand 2, single buffered']
    #allocation9 [shape = 'u8[512]{0}', space=vmem, size = 0x400, scoped, tag = 'input window, operand 3, single buffered']
    #allocation10 [shape = 's32[1]{0}', space=sflag, size = 0x4, scoped, tag = 'scoped memory for tpu_custom_call.1']
    #allocation11 [shape = 'u8[8192]{0}', space=vmem, size = 0x2000, scoped, tag = 'input window, operand 4, single buffered']
    #allocation12 [shape = 'u8[512]{0}', space=vmem, size = 0x400, scoped, tag = 'input window, operand 5, single buffered']
    #allocation13 [shape = 's32[1]{0}', space=sflag, size = 0x4, scoped, tag = 'scoped memory for tpu_custom_call.1']
    #allocation14 [shape = 'u8[8192]{0}', space=vmem, size = 0x2000, scoped, tag = 'input window, operand 6, single buffered']
    #allocation15 [shape = 'u8[512]{0}', space=vmem, size = 0x400, scoped, tag = 'input window, operand 7, single buffered']
    #allocation16 [shape = 's32[1]{0}', space=sflag, size = 0x4, scoped, tag = 'scoped memory for tpu_custom_call.1']
    #allocation17 [shape = 'u8[8192]{0}', space=vmem, size = 0x2000, scoped, tag = 'input window, operand 8, single buffered']
    #allocation18 [shape = 'u8[512]{0}', space=vmem, size = 0x400, scoped, tag = 'input window, operand 9, single buffered']
    #allocation19 [shape = 's32[1]{0}', space=sflag, size = 0x4, scoped, tag = 'scoped memory for tpu_custom_call.1']
    #allocation20 [shape = 'u8[512]{0}', space=vmem, size = 0x400, scoped, tag = 'input window, operand 10, single buffered']
    #allocation21 [shape = 'u8[512]{0}', space=vmem, size = 0x400, scoped, tag = 'input window, operand 11, single buffered']
    #allocation22 [shape = 's32[1]{0}', space=sflag, size = 0x4, scoped, tag = 'scoped memory for tpu_custom_call.1']
    #allocation23 [shape = 'u8[8192]{0}', space=vmem, size = 0x2000, scoped, tag = 'output window, operand 0']
    %17 = vsyncpa [#allocation4], 0
    %s18 = scalar_lea.sflag [#allocation4], 1
    %19 = vsyncpa %s18, 0
    %20 = vsyncpa [#allocation7], 0
    %s21 = scalar_lea.sflag [#allocation7], 1
    %22 = vsyncpa %s21, 0
    %23 = vsyncpa [#allocation10], 0
    %24 = vsyncpa [#allocation13], 0
    %25 = vsyncpa [#allocation16], 0
    %26 = vsyncpa [#allocation19], 0
    %27 = vsyncpa [#allocation22], 0
    %28 = vsyncpa [#allocation5], 0
    %s29 = scalar_lea.sflag [#allocation5], 1
    %30 = vsyncpa %s29, 0
    loop: start=0, step=1, limit=4
    $region2: #{tpu_custom_call.1} parent=1 // loop_pre_header
      _
    $region3: #{tpu_custom_call.1} parent=1 // loop_header
      %s32 = sphi 0, %s36
      %p33 = scmp.ge.s32.totalorder %s32, 4
      %s42 = sphi 0, %s44
      %s45 = sphi 0, %s42
      %s46 = sphi 0, %s45
      %s62 = sphi 0, %s46
      %s68 = sphi 0, %s70
      %s71 = sphi 0, %s68
      %s72 = sphi 0, %s71
      %s88 = sphi 0, %s72
      %s92 = sphi 0, %s92
      %s94 = sphi 0, %s92
      %s95 = sphi 0, %s94
      %s109 = sphi 0, %s95
      %s113 = sphi 0, %s113
      %s115 = sphi 0, %s113
      %s116 = sphi 0, %s115
      %s130 = sphi 0, %s116
      %s134 = sphi 0, %s134
      %s136 = sphi 0, %s134
      %s137 = sphi 0, %s136
      %s151 = sphi 0, %s137
      %s155 = sphi 0, %s155
      %s157 = sphi 0, %s155
      %s158 = sphi 0, %s157
      %s172 = sphi 0, %s158
      %s176 = sphi 0, %s176
      %s178 = sphi 0, %s176
      %s179 = sphi 0, %s178
      %s193 = sphi 0, %s179
      %s197 = sphi 0, %s197
      %s199 = sphi 0, %s197
      %s200 = sphi 0, %s199
      %s214 = sphi 0, %s200
      %s218 = sphi 0, %s218
      %s220 = sphi 0, %s218
      %s221 = sphi 0, %s220
      %s235 = sphi 0, %s221
      %s239 = sphi 0, %s239
      %s241 = sphi 0, %s239
      %s242 = sphi 0, %s241
      %s256 = sphi 0, %s242
      %s260 = sphi 0, %s260
      %s262 = sphi 0, %s260
      %s263 = sphi 0, %s262
      %s277 = sphi 0, %s263
      %s281 = sphi 0, %s281
      %s283 = sphi 0, %s281
      %s284 = sphi 0, %s283
      %s298 = sphi 0, %s284
      %s304 = sphi 0, %s306
      %s307 = sphi 0, %s304
      %s308 = sphi 0, %s307
      %s324 = sphi 0, %s308
    $region4: #{tpu_custom_call.1} parent=1 // loop_header_branch
      %35 = sbr.rel (%p33) target = $region8
    $region5: #{tpu_custom_call.1} parent=1 // loop_body
      %s37 = ssub.s32 %s32, 1
      %s38 = ssub.s32 %s32, 2
      %s39 = sadd.s32 %s32, 1
      %s40 = ssub.s32 %s32, %s39
      %p41 = scmp.eq.s32.totalorder %s40, 0
      %s43 = sadd.s32 %s42, 1
      %s44 = scalar_select %p41, %s42, %s43
      %p47 = pneg %p41
      %p48 = scmp.eq.s32.totalorder %s32, 1
      %p49 = por %p47, %p48
      %p50 = scmp.ne.s32.totalorder %s42, %s45
      %p51 = scmp.eq.s32.totalorder %s32, 0
      %p52 = por %p50, %p51
      %p53 = scmp.ne.s32.totalorder %s42, %s45
      %p54 = scmp.eq.s32.totalorder %s37, 1
      %p55 = por %p53, %p54
      %p56 = scmp.ne.s32.totalorder %s45, %s46
      %p57 = scmp.eq.s32.totalorder %s37, 0
      %p58 = por %p56, %p57
      %p59 = scmp.ne.s32.totalorder %s45, %s46
      %p60 = scmp.eq.s32.totalorder %s38, 1
      %p61 = por %p59, %p60
      %p63 = scmp.ne.s32.totalorder %s46, %s62
      %p64 = scmp.eq.s32.totalorder %s38, 0
      %p65 = por %p63, %p64
      %s66 = ssub.s32 %s32, %s39
      %p67 = scmp.eq.s32.totalorder %s66, 0
      %s69 = sadd.s32 %s68, 1
      %s70 = scalar_select %p67, %s68, %s69
      %p73 = pneg %p67
      %p74 = scmp.eq.s32.totalorder %s32, 1
      %p75 = por %p73, %p74
      %p76 = scmp.ne.s32.totalorder %s68, %s71
      %p77 = scmp.eq.s32.totalorder %s32, 0
      %p78 = por %p76, %p77
      %p79 = scmp.ne.s32.totalorder %s68, %s71
      %p80 = scmp.eq.s32.totalorder %s37, 1
      %p81 = por %p79, %p80
      %p82 = scmp.ne.s32.totalorder %s71, %s72
      %p83 = scmp.eq.s32.totalorder %s37, 0
      %p84 = por %p82, %p83
      %p85 = scmp.ne.s32.totalorder %s71, %s72
      %p86 = scmp.eq.s32.totalorder %s38, 1
      %p87 = por %p85, %p86
      %p89 = scmp.ne.s32.totalorder %s72, %s88
      %p90 = scmp.eq.s32.totalorder %s38, 0
      %p91 = por %p89, %p90
      %s93 = sadd.s32 %s92, 1
      %p96 = scmp.eq.s32.totalorder %s32, 1
      %p97 = scmp.ne.s32.totalorder %s92, %s94
      %p98 = scmp.eq.s32.totalorder %s32, 0
      %p99 = por %p97, %p98
      %p100 = scmp.ne.s32.totalorder %s92, %s94
      %p101 = scmp.eq.s32.totalorder %s37, 1
      %p102 = por %p100, %p101
      %p103 = scmp.ne.s32.totalorder %s94, %s95
      %p104 = scmp.eq.s32.totalorder %s37, 0
      %p105 = por %p103, %p104
      %p106 = scmp.ne.s32.totalorder %s94, %s95
      %p107 = scmp.eq.s32.totalorder %s38, 1
      %p108 = por %p106, %p107
      %p110 = scmp.ne.s32.totalorder %s95, %s109
      %p111 = scmp.eq.s32.totalorder %s38, 0
      %p112 = por %p110, %p111
      %s114 = sadd.s32 %s113, 1
      %p117 = scmp.eq.s32.totalorder %s32, 1
      %p118 = scmp.ne.s32.totalorder %s113, %s115
      %p119 = scmp.eq.s32.totalorder %s32, 0
      %p120 = por %p118, %p119
      %p121 = scmp.ne.s32.totalorder %s113, %s115
      %p122 = scmp.eq.s32.totalorder %s37, 1
      %p123 = por %p121, %p122
      %p124 = scmp.ne.s32.totalorder %s115, %s116
      %p125 = scmp.eq.s32.totalorder %s37, 0
      %p126 = por %p124, %p125
      %p127 = scmp.ne.s32.totalorder %s115, %s116
      %p128 = scmp.eq.s32.totalorder %s38, 1
      %p129 = por %p127, %p128
      %p131 = scmp.ne.s32.totalorder %s116, %s130
      %p132 = scmp.eq.s32.totalorder %s38, 0
      %p133 = por %p131, %p132
      %s135 = sadd.s32 %s134, 1
      %p138 = scmp.eq.s32.totalorder %s32, 1
      %p139 = scmp.ne.s32.totalorder %s134, %s136
      %p140 = scmp.eq.s32.totalorder %s32, 0
      %p141 = por %p139, %p140
      %p142 = scmp.ne.s32.totalorder %s134, %s136
      %p143 = scmp.eq.s32.totalorder %s37, 1
      %p144 = por %p142, %p143
      %p145 = scmp.ne.s32.totalorder %s136, %s137
      %p146 = scmp.eq.s32.totalorder %s37, 0
      %p147 = por %p145, %p146
      %p148 = scmp.ne.s32.totalorder %s136, %s137
      %p149 = scmp.eq.s32.totalorder %s38, 1
      %p150 = por %p148, %p149
      %p152 = scmp.ne.s32.totalorder %s137, %s151
      %p153 = scmp.eq.s32.totalorder %s38, 0
      %p154 = por %p152, %p153
      %s156 = sadd.s32 %s155, 1
      %p159 = scmp.eq.s32.totalorder %s32, 1
      %p160 = scmp.ne.s32.totalorder %s155, %s157
      %p161 = scmp.eq.s32.totalorder %s32, 0
      %p162 = por %p160, %p161
      %p163 = scmp.ne.s32.totalorder %s155, %s157
      %p164 = scmp.eq.s32.totalorder %s37, 1
      %p165 = por %p163, %p164
      %p166 = scmp.ne.s32.totalorder %s157, %s158
      %p167 = scmp.eq.s32.totalorder %s37, 0
      %p168 = por %p166, %p167
      %p169 = scmp.ne.s32.totalorder %s157, %s158
      %p170 = scmp.eq.s32.totalorder %s38, 1
      %p171 = por %p169, %p170
      %p173 = scmp.ne.s32.totalorder %s158, %s172
      %p174 = scmp.eq.s32.totalorder %s38, 0
      %p175 = por %p173, %p174
      %s177 = sadd.s32 %s176, 1
      %p180 = scmp.eq.s32.totalorder %s32, 1
      %p181 = scmp.ne.s32.totalorder %s176, %s178
      %p182 = scmp.eq.s32.totalorder %s32, 0
      %p183 = por %p181, %p182
      %p184 = scmp.ne.s32.totalorder %s176, %s178
      %p185 = scmp.eq.s32.totalorder %s37, 1
      %p186 = por %p184, %p185
      %p187 = scmp.ne.s32.totalorder %s178, %s179
      %p188 = scmp.eq.s32.totalorder %s37, 0
      %p189 = por %p187, %p188
      %p190 = scmp.ne.s32.totalorder %s178, %s179
      %p191 = scmp.eq.s32.totalorder %s38, 1
      %p192 = por %p190, %p191
      %p194 = scmp.ne.s32.totalorder %s179, %s193
      %p195 = scmp.eq.s32.totalorder %s38, 0
      %p196 = por %p194, %p195
      %s198 = sadd.s32 %s197, 1
      %p201 = scmp.eq.s32.totalorder %s32, 1
      %p202 = scmp.ne.s32.totalorder %s197, %s199
      %p203 = scmp.eq.s32.totalorder %s32, 0
      %p204 = por %p202, %p203
      %p205 = scmp.ne.s32.totalorder %s197, %s199
      %p206 = scmp.eq.s32.totalorder %s37, 1
      %p207 = por %p205, %p206
      %p208 = scmp.ne.s32.totalorder %s199, %s200
      %p209 = scmp.eq.s32.totalorder %s37, 0
      %p210 = por %p208, %p209
      %p211 = scmp.ne.s32.totalorder %s199, %s200
      %p212 = scmp.eq.s32.totalorder %s38, 1
      %p213 = por %p211, %p212
      %p215 = scmp.ne.s32.totalorder %s200, %s214
      %p216 = scmp.eq.s32.totalorder %s38, 0
      %p217 = por %p215, %p216
      %s219 = sadd.s32 %s218, 1
      %p222 = scmp.eq.s32.totalorder %s32, 1
      %p223 = scmp.ne.s32.totalorder %s218, %s220
      %p224 = scmp.eq.s32.totalorder %s32, 0
      %p225 = por %p223, %p224
      %p226 = scmp.ne.s32.totalorder %s218, %s220
      %p227 = scmp.eq.s32.totalorder %s37, 1
      %p228 = por %p226, %p227
      %p229 = scmp.ne.s32.totalorder %s220, %s221
      %p230 = scmp.eq.s32.totalorder %s37, 0
      %p231 = por %p229, %p230
      %p232 = scmp.ne.s32.totalorder %s220, %s221
      %p233 = scmp.eq.s32.totalorder %s38, 1
      %p234 = por %p232, %p233
      %p236 = scmp.ne.s32.totalorder %s221, %s235
      %p237 = scmp.eq.s32.totalorder %s38, 0
      %p238 = por %p236, %p237
      %s240 = sadd.s32 %s239, 1
      %p243 = scmp.eq.s32.totalorder %s32, 1
      %p244 = scmp.ne.s32.totalorder %s239, %s241
      %p245 = scmp.eq.s32.totalorder %s32, 0
      %p246 = por %p244, %p245
      %p247 = scmp.ne.s32.totalorder %s239, %s241
      %p248 = scmp.eq.s32.totalorder %s37, 1
      %p249 = por %p247, %p248
      %p250 = scmp.ne.s32.totalorder %s241, %s242
      %p251 = scmp.eq.s32.totalorder %s37, 0
      %p252 = por %p250, %p251
      %p253 = scmp.ne.s32.totalorder %s241, %s242
      %p254 = scmp.eq.s32.totalorder %s38, 1
      %p255 = por %p253, %p254
      %p257 = scmp.ne.s32.totalorder %s242, %s256
      %p258 = scmp.eq.s32.totalorder %s38, 0
      %p259 = por %p257, %p258
      %s261 = sadd.s32 %s260, 1
      %p264 = scmp.eq.s32.totalorder %s32, 1
      %p265 = scmp.ne.s32.totalorder %s260, %s262
      %p266 = scmp.eq.s32.totalorder %s32, 0
      %p267 = por %p265, %p266
      %p268 = scmp.ne.s32.totalorder %s260, %s262
      %p269 = scmp.eq.s32.totalorder %s37, 1
      %p270 = por %p268, %p269
      %p271 = scmp.ne.s32.totalorder %s262, %s263
      %p272 = scmp.eq.s32.totalorder %s37, 0
      %p273 = por %p271, %p272
      %p274 = scmp.ne.s32.totalorder %s262, %s263
      %p275 = scmp.eq.s32.totalorder %s38, 1
      %p276 = por %p274, %p275
      %p278 = scmp.ne.s32.totalorder %s263, %s277
      %p279 = scmp.eq.s32.totalorder %s38, 0
      %p280 = por %p278, %p279
      %s282 = sadd.s32 %s281, 1
      %p285 = scmp.eq.s32.totalorder %s32, 1
      %p286 = scmp.ne.s32.totalorder %s281, %s283
      %p287 = scmp.eq.s32.totalorder %s32, 0
      %p288 = por %p286, %p287
      %p289 = scmp.ne.s32.totalorder %s281, %s283
      %p290 = scmp.eq.s32.totalorder %s37, 1
      %p291 = por %p289, %p290
      %p292 = scmp.ne.s32.totalorder %s283, %s284
      %p293 = scmp.eq.s32.totalorder %s37, 0
      %p294 = por %p292, %p293
      %p295 = scmp.ne.s32.totalorder %s283, %s284
      %p296 = scmp.eq.s32.totalorder %s38, 1
      %p297 = por %p295, %p296
      %p299 = scmp.ne.s32.totalorder %s284, %s298
      %p300 = scmp.eq.s32.totalorder %s38, 0
      %p301 = por %p299, %p300
      %s302 = ssub.s32 %s32, %s39
      %p303 = scmp.eq.s32.totalorder %s302, 0
      %s305 = sadd.s32 %s304, 1
      %s306 = scalar_select %p303, %s304, %s305
      %p309 = pneg %p303
      %p310 = scmp.eq.s32.totalorder %s32, 1
      %p311 = por %p309, %p310
      %p312 = scmp.ne.s32.totalorder %s304, %s307
      %p313 = scmp.eq.s32.totalorder %s32, 0
      %p314 = por %p312, %p313
      %p315 = scmp.ne.s32.totalorder %s304, %s307
      %p316 = scmp.eq.s32.totalorder %s37, 1
      %p317 = por %p315, %p316
      %p318 = scmp.ne.s32.totalorder %s307, %s308
      %p319 = scmp.eq.s32.totalorder %s37, 0
      %p320 = por %p318, %p319
      %p321 = scmp.ne.s32.totalorder %s307, %s308
      %p322 = scmp.eq.s32.totalorder %s38, 1
      %p323 = por %p321, %p322
      %p325 = scmp.ne.s32.totalorder %s308, %s324
      %p326 = scmp.eq.s32.totalorder %s38, 0
      %p327 = por %p325, %p326
      %p328 = scmp.le.s32.totalorder 1, %s32
      %p329 = scmp.lt.s32.totalorder %s32, 3
      %p330 = pnand %p328, %p329
      %p331 = pneg %p330
      // Predicated region
      $region9: #{tpu_custom_call.1} parent=5 // pred_check
        _
      $region10: #{tpu_custom_call.1} parent=5 // pred_check_branch
        %333 = sbr.rel (%p330) target = $region12
      $region11: #{tpu_custom_call.1} parent=5 // pred_region
        %s334 = ssub.s32 %s32, 1
        // Predicated region
        $region13: #{tpu_custom_call.1} parent=11 // pred_check
          %p335 = pneg %p105
        $region14: #{tpu_custom_call.1} parent=11 // pred_check_branch
          %337 = sbr.rel (%p335) target = $region16
        $region15: #{tpu_custom_call.1} parent=11 // pred_region
          %s339 = ssub.s32 256, 256
          %340 = vsyncadd [#allocation7], %s339
          %s341 = sshll.u32 [#allocation8], 4
          %s342 = int_to_ptr.vmem [resolvable:$true] %s341
          %347 = dma.hbm_to_vmem [thread:$0]  %s2, 256, %s342, [#allocation7], 64, 64, 4
        $region16: #{tpu_custom_call.1} parent=11 // pred_fallthru
          _
        // Predicated region
        $region17: #{tpu_custom_call.1} parent=11 // pred_check
          %p348 = pneg %p126
        $region18: #{tpu_custom_call.1} parent=11 // pred_check_branch
          %350 = sbr.rel (%p348) target = $region20
        $region19: #{tpu_custom_call.1} parent=11 // pred_region
          %s352 = ssub.s32 16, 16
          %353 = vsyncadd [#allocation10], %s352
          %s355 = sshll.u32 [#allocation9], 4
          %s356 = int_to_ptr.vmem [resolvable:$true] %s355
          %358 = dma.hbm_to_vmem [thread:$0]  %s3, 16, %s356, [#allocation10]
        $region20: #{tpu_custom_call.1} parent=11 // pred_fallthru
          _
        // Predicated region
        $region21: #{tpu_custom_call.1} parent=11 // pred_check
          %p359 = pneg %p147
        $region22: #{tpu_custom_call.1} parent=11 // pred_check_branch
          %361 = sbr.rel (%p359) target = $region24
        $region23: #{tpu_custom_call.1} parent=11 // pred_region
          %s363 = ssub.s32 256, 256
          %364 = vsyncadd [#allocation10], %s363
          %s365 = sshll.u32 [#allocation11], 4
          %s366 = int_to_ptr.vmem [resolvable:$true] %s365
          %371 = dma.hbm_to_vmem [thread:$0]  %s4, 256, %s366, [#allocation10], 64, 64, 4
        $region24: #{tpu_custom_call.1} parent=11 // pred_fallthru
          _
        // Predicated region
        $region25: #{tpu_custom_call.1} parent=11 // pred_check
          %p372 = pneg %p168
        $region26: #{tpu_custom_call.1} parent=11 // pred_check_branch
          %374 = sbr.rel (%p372) target = $region28
        $region27: #{tpu_custom_call.1} parent=11 // pred_region
          %s376 = ssub.s32 16, 16
          %377 = vsyncadd [#allocation13], %s376
          %s379 = sshll.u32 [#allocation12], 4
          %s380 = int_to_ptr.vmem [resolvable:$true] %s379
          %382 = dma.hbm_to_vmem [thread:$0]  %s5, 16, %s380, [#allocation13]
        $region28: #{tpu_custom_call.1} parent=11 // pred_fallthru
          _
        // Predicated region
        $region29: #{tpu_custom_call.1} parent=11 // pred_check
          %p383 = pneg %p189
        $region30: #{tpu_custom_call.1} parent=11 // pred_check_branch
          %385 = sbr.rel (%p383) target = $region32
        $region31: #{tpu_custom_call.1} parent=11 // pred_region
          %s387 = ssub.s32 256, 256
          %388 = vsyncadd [#allocation13], %s387
          %s389 = sshll.u32 [#allocation14], 4
          %s390 = int_to_ptr.vmem [resolvable:$true] %s389
          %395 = dma.hbm_to_vmem [thread:$0]  %s6, 256, %s390, [#allocation13], 64, 64, 4
        $region32: #{tpu_custom_call.1} parent=11 // pred_fallthru
          _
        // Predicated region
        $region33: #{tpu_custom_call.1} parent=11 // pred_check
          %p396 = pneg %p210
        $region34: #{tpu_custom_call.1} parent=11 // pred_check_branch
          %398 = sbr.rel (%p396) target = $region36
        $region35: #{tpu_custom_call.1} parent=11 // pred_region
          %s400 = ssub.s32 16, 16
          %401 = vsyncadd [#allocation16], %s400
          %s403 = sshll.u32 [#allocation15], 4
          %s404 = int_to_ptr.vmem [resolvable:$true] %s403
          %406 = dma.hbm_to_vmem [thread:$0]  %s7, 16, %s404, [#allocation16]
        $region36: #{tpu_custom_call.1} parent=11 // pred_fallthru
          _
        // Predicated region
        $region37: #{tpu_custom_call.1} parent=11 // pred_check
          %p407 = pneg %p231
        $region38: #{tpu_custom_call.1} parent=11 // pred_check_branch
          %409 = sbr.rel (%p407) target = $region40
        $region39: #{tpu_custom_call.1} parent=11 // pred_region
          %s411 = ssub.s32 256, 256
          %412 = vsyncadd [#allocation16], %s411
          %s413 = sshll.u32 [#allocation17], 4
          %s414 = int_to_ptr.vmem [resolvable:$true] %s413
          %419 = dma.hbm_to_vmem [thread:$0]  %s8, 256, %s414, [#allocation16], 64, 64, 4
        $region40: #{tpu_custom_call.1} parent=11 // pred_fallthru
          _
        // Predicated region
        $region41: #{tpu_custom_call.1} parent=11 // pred_check
          %p420 = pneg %p252
        $region42: #{tpu_custom_call.1} parent=11 // pred_check_branch
          %422 = sbr.rel (%p420) target = $region44
        $region43: #{tpu_custom_call.1} parent=11 // pred_region
          %s424 = ssub.s32 16, 16
          %425 = vsyncadd [#allocation19], %s424
          %s427 = sshll.u32 [#allocation18], 4
          %s428 = int_to_ptr.vmem [resolvable:$true] %s427
          %430 = dma.hbm_to_vmem [thread:$0]  %s9, 16, %s428, [#allocation19]
        $region44: #{tpu_custom_call.1} parent=11 // pred_fallthru
          _
        // Predicated region
        $region45: #{tpu_custom_call.1} parent=11 // pred_check
          %p431 = pneg %p273
        $region46: #{tpu_custom_call.1} parent=11 // pred_check_branch
          %433 = sbr.rel (%p431) target = $region48
        $region47: #{tpu_custom_call.1} parent=11 // pred_region
          %s435 = ssub.s32 16, 16
          %436 = vsyncadd [#allocation19], %s435
          %s438 = sshll.u32 [#allocation20], 4
          %s439 = int_to_ptr.vmem [resolvable:$true] %s438
          %441 = dma.hbm_to_vmem [thread:$0]  %s10, 16, %s439, [#allocation19]
        $region48: #{tpu_custom_call.1} parent=11 // pred_fallthru
          _
        // Predicated region
        $region49: #{tpu_custom_call.1} parent=11 // pred_check
          %p442 = pneg %p294
        $region50: #{tpu_custom_call.1} parent=11 // pred_check_branch
          %444 = sbr.rel (%p442) target = $region52
        $region51: #{tpu_custom_call.1} parent=11 // pred_region
          %s446 = ssub.s32 16, 16
          %447 = vsyncadd [#allocation22], %s446
          %s449 = sshll.u32 [#allocation21], 4
          %s450 = int_to_ptr.vmem [resolvable:$true] %s449
          %452 = dma.hbm_to_vmem [thread:$0]  %s11, 16, %s450, [#allocation22]
        $region52: #{tpu_custom_call.1} parent=11 // pred_fallthru
          _
      $region12: #{tpu_custom_call.1} parent=5 // pred_fallthru
        _
      %p453 = scmp.lt.s32.totalorder %s32, 2
      // Predicated region
      $region53: #{tpu_custom_call.1} parent=5 // pred_check
        %p454 = pneg %p453
      $region54: #{tpu_custom_call.1} parent=5 // pred_check_branch
        %456 = sbr.rel (%p454) target = $region56
      $region55: #{tpu_custom_call.1} parent=5 // pred_region
        // Predicated region
        $region57: #{tpu_custom_call.1} parent=55 // pred_check
          %p457 = pneg %p52
        $region58: #{tpu_custom_call.1} parent=55 // pred_check_branch
          %459 = sbr.rel (%p457) target = $region60
        $region59: #{tpu_custom_call.1} parent=55 // pred_region
          %s460 = sand.u32 %s42, 1
          %s461 = scalar_lea.sflag [#allocation4], %s460
          %s462 = sand.u32 %s42, 1
          %s463 = smul.addr %s462, 8
          %s464 = scalar_lea.vmem [#allocation3], %s463
          %s466 = ssub.s32 128, 128
          %467 = vsyncadd %s461, %s466
          %s468 = smul.addr %s32, 128
          %s469 = scalar_lea.hbm %s0, %s468
          %s471 = sshll.u32 %s464, 4
          %s472 = int_to_ptr.vmem [resolvable:$true] %s471
          %474 = dma.hbm_to_vmem [thread:$0]  %s469, 128, %s472, %s461
        $region60: #{tpu_custom_call.1} parent=55 // pred_fallthru
          _
        // Predicated region
        $region61: #{tpu_custom_call.1} parent=55 // pred_check
          %p475 = pneg %p78
        $region62: #{tpu_custom_call.1} parent=55 // pred_check_branch
          %477 = sbr.rel (%p475) target = $region64
        $region63: #{tpu_custom_call.1} parent=55 // pred_region
          %s478 = sand.u32 %s32, 1
          %s479 = scalar_lea.sflag [#allocation7], %s478
          %s480 = sand.u32 %s68, 1
          %s481 = scalar_lea.vmem [#allocation6], %s480
          %s483 = ssub.s32 16, 16
          %484 = vsyncadd %s479, %s483
          %s485 = smul.addr %s32, 16
          %s486 = scalar_lea.hbm %s1, %s485
          %s488 = sshll.u32 %s481, 4
          %s489 = int_to_ptr.vmem [resolvable:$true] %s488
          %491 = dma.hbm_to_vmem [thread:$0]  %s486, 16, %s489, %s479
        $region64: #{tpu_custom_call.1} parent=55 // pred_fallthru
          _
      $region56: #{tpu_custom_call.1} parent=5 // pred_fallthru
        _
      %p492 = scmp.le.s32.totalorder 1, %s32
      %p493 = scmp.lt.s32.totalorder %s32, 3
      %p494 = pnand %p492, %p493
      %p495 = pneg %p494
      // Predicated region
      $region65: #{tpu_custom_call.1} parent=5 // pred_check
        _
      $region66: #{tpu_custom_call.1} parent=5 // pred_check_branch
        %497 = sbr.rel (%p494) target = $region68
      $region67: #{tpu_custom_call.1} parent=5 // pred_region
        %s498 = ssub.s32 %s32, 1
        %s499 = sand.u32 %s45, 1
        %s500 = scalar_lea.sflag [#allocation4], %s499
        %s501 = sand.u32 %s45, 1
        %s502 = smul.addr %s501, 8
        %s503 = scalar_lea.vmem [#allocation3], %s502
        // Predicated region
        $region69: #{tpu_custom_call.1} parent=67 // pred_check
          %p504 = pneg %p58
        $region70: #{tpu_custom_call.1} parent=67 // pred_check_branch
          %506 = sbr.rel (%p504) target = $region72
        $region71: #{tpu_custom_call.1} parent=67 // pred_region
          %507 = dma.done %s500, 128
        $region72: #{tpu_custom_call.1} parent=67 // pred_fallthru
          _
        %s508 = sand.u32 %s37, 1
        %s509 = scalar_lea.sflag [#allocation7], %s508
        %s510 = sand.u32 %s71, 1
        %s511 = scalar_lea.vmem [#allocation6], %s510
        // Predicated region
        $region73: #{tpu_custom_call.1} parent=67 // pred_check
          %p512 = pneg %p84
        $region74: #{tpu_custom_call.1} parent=67 // pred_check_branch
          %514 = sbr.rel (%p512) target = $region76
        $region75: #{tpu_custom_call.1} parent=67 // pred_region
          %515 = dma.done %s509, 16
        $region76: #{tpu_custom_call.1} parent=67 // pred_fallthru
          _
        // Predicated region
        $region77: #{tpu_custom_call.1} parent=67 // pred_check
          %p516 = pneg %p105
        $region78: #{tpu_custom_call.1} parent=67 // pred_check_branch
          %518 = sbr.rel (%p516) target = $region80
        $region79: #{tpu_custom_call.1} parent=67 // pred_region
          %519 = dma.done [#allocation7], 256
        $region80: #{tpu_custom_call.1} parent=67 // pred_fallthru
          _
        // Predicated region
        $region81: #{tpu_custom_call.1} parent=67 // pred_check
          %p520 = pneg %p126
        $region82: #{tpu_custom_call.1} parent=67 // pred_check_branch
          %522 = sbr.rel (%p520) target = $region84
        $region83: #{tpu_custom_call.1} parent=67 // pred_region
          %523 = dma.done [#allocation10], 16
        $region84: #{tpu_custom_call.1} parent=67 // pred_fallthru
          _
        // Predicated region
        $region85: #{tpu_custom_call.1} parent=67 // pred_check
          %p524 = pneg %p147
        $region86: #{tpu_custom_call.1} parent=67 // pred_check_branch
          %526 = sbr.rel (%p524) target = $region88
        $region87: #{tpu_custom_call.1} parent=67 // pred_region
          %527 = dma.done [#allocation10], 256
        $region88: #{tpu_custom_call.1} parent=67 // pred_fallthru
          _
        // Predicated region
        $region89: #{tpu_custom_call.1} parent=67 // pred_check
          %p528 = pneg %p168
        $region90: #{tpu_custom_call.1} parent=67 // pred_check_branch
          %530 = sbr.rel (%p528) target = $region92
        $region91: #{tpu_custom_call.1} parent=67 // pred_region
          %531 = dma.done [#allocation13], 16
        $region92: #{tpu_custom_call.1} parent=67 // pred_fallthru
          _
        // Predicated region
        $region93: #{tpu_custom_call.1} parent=67 // pred_check
          %p532 = pneg %p189
        $region94: #{tpu_custom_call.1} parent=67 // pred_check_branch
          %534 = sbr.rel (%p532) target = $region96
        $region95: #{tpu_custom_call.1} parent=67 // pred_region
          %535 = dma.done [#allocation13], 256
        $region96: #{tpu_custom_call.1} parent=67 // pred_fallthru
          _
        // Predicated region
        $region97: #{tpu_custom_call.1} parent=67 // pred_check
          %p536 = pneg %p210
        $region98: #{tpu_custom_call.1} parent=67 // pred_check_branch
          %538 = sbr.rel (%p536) target = $region100
        $region99: #{tpu_custom_call.1} parent=67 // pred_region
          %539 = dma.done [#allocation16], 16
        $region100: #{tpu_custom_call.1} parent=67 // pred_fallthru
          _
        // Predicated region
        $region101: #{tpu_custom_call.1} parent=67 // pred_check
          %p540 = pneg %p231
        $region102: #{tpu_custom_call.1} parent=67 // pred_check_branch
          %542 = sbr.rel (%p540) target = $region104
        $region103: #{tpu_custom_call.1} parent=67 // pred_region
          %543 = dma.done [#allocation16], 256
        $region104: #{tpu_custom_call.1} parent=67 // pred_fallthru
          _
        // Predicated region
        $region105: #{tpu_custom_call.1} parent=67 // pred_check
          %p544 = pneg %p252
        $region106: #{tpu_custom_call.1} parent=67 // pred_check_branch
          %546 = sbr.rel (%p544) target = $region108
        $region107: #{tpu_custom_call.1} parent=67 // pred_region
          %547 = dma.done [#allocation19], 16
        $region108: #{tpu_custom_call.1} parent=67 // pred_fallthru
          _
        // Predicated region
        $region109: #{tpu_custom_call.1} parent=67 // pred_check
          %p548 = pneg %p273
        $region110: #{tpu_custom_call.1} parent=67 // pred_check_branch
          %550 = sbr.rel (%p548) target = $region112
        $region111: #{tpu_custom_call.1} parent=67 // pred_region
          %551 = dma.done [#allocation19], 16
        $region112: #{tpu_custom_call.1} parent=67 // pred_fallthru
          _
        // Predicated region
        $region113: #{tpu_custom_call.1} parent=67 // pred_check
          %p552 = pneg %p294
        $region114: #{tpu_custom_call.1} parent=67 // pred_check_branch
          %554 = sbr.rel (%p552) target = $region116
        $region115: #{tpu_custom_call.1} parent=67 // pred_region
          %555 = dma.done [#allocation22], 16
        $region116: #{tpu_custom_call.1} parent=67 // pred_fallthru
          _
        %s556 = sand.u32 %s45, 1
        %s557 = scalar_lea.sflag [#allocation4], %s556
        %s558 = sand.u32 %s45, 1
        %s559 = smul.addr %s558, 8
        %s560 = scalar_lea.vmem [#allocation3], %s559
        %p561 = pneg %p58
        %p562 = pneg %p55
        %s563 = sand.u32 %s37, 1
        %s564 = scalar_lea.sflag [#allocation7], %s563
        %s565 = sand.u32 %s71, 1
        %s566 = scalar_lea.vmem [#allocation6], %s565
        %p567 = pneg %p84
        %p568 = pneg %p81
        %p569 = pneg %p105
        %p570 = pneg %p102
        %p571 = pneg %p126
        %p572 = pneg %p123
        %p573 = pneg %p147
        %p574 = pneg %p144
        %p575 = pneg %p168
        %p576 = pneg %p165
        %p577 = pneg %p189
        %p578 = pneg %p186
        %p579 = pneg %p210
        %p580 = pneg %p207
        %p581 = pneg %p231
        %p582 = pneg %p228
        %p583 = pneg %p252
        %p584 = pneg %p249
        %p585 = pneg %p273
        %p586 = pneg %p270
        %p587 = pneg %p294
        %p588 = pneg %p291
        %p589 = pneg %p320
        %p590 = pneg %p317
        %s591 = sand.u32 %s307, 1
        %s592 = scalar_lea.sflag [#allocation5], %s591
        %s593 = sand.u32 %s307, 1
        %s594 = smul.addr %s593, 8
        %s595 = scalar_lea.vmem [#allocation23], %s594
        %v597 = vld [vmem:[%s503] sm:$0xff]
        %v598 = vpack.c.bf16 %v597, %v597
        %v599 = vld [vmem:[#allocation8] sm:$0xf]
        %v600 = vld [vmem:[#allocation8 + $0x4] sm:$0xf]
        %v601 = vld [vmem:[#allocation8 + $0x8] sm:$0xf]
        %v602 = vld [vmem:[#allocation8 + $0xc] sm:$0xf]
        %v603 = vld [vmem:[#allocation9] sm:$0x1]
        %v605 = vlaneseq
        %v606 = vshrl.u32 %v605, 7
        %v607 = vsub.s32 0, %v606
        %v608 = vrot.slane %v603, %v607
        %v614 = vunpack.c.l.b16 %v599
        %v615 = vunpack.c.l.b16 %v600
        %v616 = vunpack.c.l.b16 %v601
        %v617 = vunpack.c.l.b16 %v602
        %v618 = vpack.c.b16 %v615, %v614
        %v619 = vpack.c.b16 %v617, %v616
        %vm622 = vcmask 261120
        %v624 = vsel %vm622, %v598, 0
        %626 = vmatprep.subr.bf16.mxu0 0
        %627 = vmatpush1.bf16.msra.mxu0 %v618
        %628 = vmatprep.subr.bf16.mxu0 0
        %629 = vmatpush1.bf16.msra.mxu0 %v619
        %630 = vmatprep.subr.bf16.mxu0 0
        %631 = vmatpush1.bf16.msra.mxu0 0
        %632 = vmatprep.subr.bf16.mxu0 0
        %633 = vmatpush1.bf16.msra.mxu0 0
        %634 = vmatprep.subr.bf16.mxu0 0
        %635 = vmatpush1.bf16.msra.mxu0 0
        %636 = vmatprep.subr.bf16.mxu0 0
        %637 = vmatpush1.bf16.msra.mxu0 0
        %638 = vmatprep.subr.bf16.mxu0 0
        %639 = vmatpush1.bf16.msra.mxu0 0
        %640 = vmatprep.subr.bf16.mxu0 0
        %641 = vmatpush1.bf16.msra.mxu0 0
        %642 = vmatprep.subr.bf16.mxu0 0
        %643 = vmatpush1.bf16.msra.mxu0 0
        %644 = vmatprep.subr.bf16.mxu0 0
        %645 = vmatpush1.bf16.msra.mxu0 0
        %646 = vmatprep.subr.bf16.mxu0 0
        %647 = vmatpush1.bf16.msra.mxu0 0
        %648 = vmatprep.subr.bf16.mxu0 0
        %649 = vmatpush1.bf16.msra.mxu0 0
        %650 = vmatprep.subr.bf16.mxu0 0
        %651 = vmatpush1.bf16.msra.mxu0 0
        %652 = vmatprep.subr.bf16.mxu0 0
        %653 = vmatpush1.bf16.msra.mxu0 0
        %654 = vmatprep.subr.bf16.mxu0 0
        %655 = vmatpush1.bf16.msra.mxu0 0
        %656 = vmatprep.subr.bf16.mxu0 0
        %657 = vmatpush1.bf16.msra.mxu0 0
        %658 = vmatprep.mubr.bf16.mxu0 0
        %659 = vmatmul.mubr.bf16.gmra.mrb[0].mxu0 %v624
        %v660 = vpop.f32.mrb[0].mxu0
        %v661 = vadd.f32 %v608, %v660
        %v662 = vpop.f32.mrb[0].mxu0
        %v663 = vpop.f32.mrb[0].mxu0
        %v664 = vpop.f32.mrb[0].mxu0
        %665 = vdwg.mxu0
        %v666 = vpack.c.bf16 %v661, %v661
        %v667 = vld [vmem:[#allocation11] sm:$0xf]
        %v668 = vld [vmem:[#allocation11 + $0x4] sm:$0xf]
        %v669 = vld [vmem:[#allocation11 + $0x8] sm:$0xf]
        %v670 = vld [vmem:[#allocation11 + $0xc] sm:$0xf]
        %v671 = vld [vmem:[#allocation12] sm:$0x1]
        %v673 = vlaneseq
        %v674 = vshrl.u32 %v673, 7
        %v675 = vsub.s32 0, %v674
        %v676 = vrot.slane %v671, %v675
        %v682 = vunpack.c.l.b16 %v667
        %v683 = vunpack.c.l.b16 %v668
        %v684 = vunpack.c.l.b16 %v669
        %v685 = vunpack.c.l.b16 %v670
        %v686 = vpack.c.b16 %v683, %v682
        %v687 = vpack.c.b16 %v685, %v684
        %690 = vmatprep.subr.bf16.mxu0 0
        %691 = vmatpush1.bf16.msra.mxu0 %v686
        %692 = vmatprep.subr.bf16.mxu0 0
        %693 = vmatpush1.bf16.msra.mxu0 %v687
        %694 = vmatprep.subr.bf16.mxu0 0
        %695 = vmatpush1.bf16.msra.mxu0 0
        %696 = vmatprep.subr.bf16.mxu0 0
        %697 = vmatpush1.bf16.msra.mxu0 0
        %698 = vmatprep.subr.bf16.mxu0 0
        %699 = vmatpush1.bf16.msra.mxu0 0
        %700 = vmatprep.subr.bf16.mxu0 0
        %701 = vmatpush1.bf16.msra.mxu0 0
        %702 = vmatprep.subr.bf16.mxu0 0
        %703 = vmatpush1.bf16.msra.mxu0 0
        %704 = vmatprep.subr.bf16.mxu0 0
        %705 = vmatpush1.bf16.msra.mxu0 0
        %706 = vmatprep.subr.bf16.mxu0 0
        %707 = vmatpush1.bf16.msra.mxu0 0
        %708 = vmatprep.subr.bf16.mxu0 0
        %709 = vmatpush1.bf16.msra.mxu0 0
        %710 = vmatprep.subr.bf16.mxu0 0
        %711 = vmatpush1.bf16.msra.mxu0 0
        %712 = vmatprep.subr.bf16.mxu0 0
        %713 = vmatpush1.bf16.msra.mxu0 0
        %714 = vmatprep.subr.bf16.mxu0 0
        %715 = vmatpush1.bf16.msra.mxu0 0
        %716 = vmatprep.subr.bf16.mxu0 0
        %717 = vmatpush1.bf16.msra.mxu0 0
        %718 = vmatprep.subr.bf16.mxu0 0
        %719 = vmatpush1.bf16.msra.mxu0 0
        %720 = vmatprep.subr.bf16.mxu0 0
        %721 = vmatpush1.bf16.msra.mxu0 0
        %722 = vmatprep.mubr.bf16.mxu0 0
        %723 = vmatmul.mubr.bf16.gmra.mrb[0].mxu0 %v624
        %v724 = vpop.f32.mrb[0].mxu0
        %v725 = vadd.f32 %v676, %v724
        %v726 = vpop.f32.mrb[0].mxu0
        %v727 = vpop.f32.mrb[0].mxu0
        %v728 = vpop.f32.mrb[0].mxu0
        %729 = vdwg.mxu0
        %v730 = vpack.c.bf16 %v725, %v725
        %v731 = vld [vmem:[#allocation14] sm:$0xf]
        %v732 = vld [vmem:[#allocation14 + $0x4] sm:$0xf]
        %v733 = vld [vmem:[#allocation14 + $0x8] sm:$0xf]
        %v734 = vld [vmem:[#allocation14 + $0xc] sm:$0xf]
        %v735 = vld [vmem:[#allocation15] sm:$0x1]
        %v737 = vlaneseq
        %v738 = vshrl.u32 %v737, 7
        %v739 = vsub.s32 0, %v738
        %v740 = vrot.slane %v735, %v739
        %v746 = vunpack.c.l.b16 %v731
        %v747 = vunpack.c.l.b16 %v732
        %v748 = vunpack.c.l.b16 %v733
        %v749 = vunpack.c.l.b16 %v734
        %v750 = vpack.c.b16 %v747, %v746
        %v751 = vpack.c.b16 %v749, %v748
        %754 = vmatprep.subr.bf16.mxu0 0
        %755 = vmatpush1.bf16.msra.mxu0 %v750
        %756 = vmatprep.subr.bf16.mxu0 0
        %757 = vmatpush1.bf16.msra.mxu0 %v751
        %758 = vmatprep.subr.bf16.mxu0 0
        %759 = vmatpush1.bf16.msra.mxu0 0
        %760 = vmatprep.subr.bf16.mxu0 0
        %761 = vmatpush1.bf16.msra.mxu0 0
        %762 = vmatprep.subr.bf16.mxu0 0
        %763 = vmatpush1.bf16.msra.mxu0 0
        %764 = vmatprep.subr.bf16.mxu0 0
        %765 = vmatpush1.bf16.msra.mxu0 0
        %766 = vmatprep.subr.bf16.mxu0 0
        %767 = vmatpush1.bf16.msra.mxu0 0
        %768 = vmatprep.subr.bf16.mxu0 0
        %769 = vmatpush1.bf16.msra.mxu0 0
        %770 = vmatprep.subr.bf16.mxu0 0
        %771 = vmatpush1.bf16.msra.mxu0 0
        %772 = vmatprep.subr.bf16.mxu0 0
        %773 = vmatpush1.bf16.msra.mxu0 0
        %774 = vmatprep.subr.bf16.mxu0 0
        %775 = vmatpush1.bf16.msra.mxu0 0
        %776 = vmatprep.subr.bf16.mxu0 0
        %777 = vmatpush1.bf16.msra.mxu0 0
        %778 = vmatprep.subr.bf16.mxu0 0
        %779 = vmatpush1.bf16.msra.mxu0 0
        %780 = vmatprep.subr.bf16.mxu0 0
        %781 = vmatpush1.bf16.msra.mxu0 0
        %782 = vmatprep.subr.bf16.mxu0 0
        %783 = vmatpush1.bf16.msra.mxu0 0
        %784 = vmatprep.subr.bf16.mxu0 0
        %785 = vmatpush1.bf16.msra.mxu0 0
        %786 = vmatprep.mubr.bf16.mxu0 0
        %787 = vmatmul.mubr.bf16.gmra.mrb[0].mxu0 %v624
        %v788 = vpop.f32.mrb[0].mxu0
        %v789 = vadd.f32 %v740, %v788
        %v790 = vpop.f32.mrb[0].mxu0
        %v791 = vpop.f32.mrb[0].mxu0
        %v792 = vpop.f32.mrb[0].mxu0
        %793 = vdwg.mxu0
        %v794 = vpack.c.bf16 %v789, %v789
        %v795 = vld [vmem:[%s511] sm:$0x1]
        %v796 = vsub.f32 1.0, %v795
        %v797 = vmul.f32 %v796, -10000.0
        %vm798 = vcmask 64512
        %v800 = vsel %vm798, %v666, 0
        %v803 = vsel %vm798, %v730, 0
        %805 = vmatprep.subr.bf16.mxu0 0
        %806 = vmatpush1.bf16.xpose.msra.mxu0 %v803
        %807 = vmatprep.subr.bf16.mxu0 0
        %808 = vmatpush1.bf16.xpose.msra.mxu0 0
        %809 = vmatprep.subr.bf16.mxu0 0
        %810 = vmatpush1.bf16.xpose.msra.mxu0 0
        %811 = vmatprep.subr.bf16.mxu0 0
        %812 = vmatpush1.bf16.xpose.msra.mxu0 0
        %813 = vmatprep.subr.bf16.mxu0 0
        %814 = vmatpush1.bf16.xpose.msra.mxu0 0
        %815 = vmatprep.subr.bf16.mxu0 0
        %816 = vmatpush1.bf16.xpose.msra.mxu0 0
        %817 = vmatprep.subr.bf16.mxu0 0
        %818 = vmatpush1.bf16.xpose.msra.mxu0 0
        %819 = vmatprep.subr.bf16.mxu0 0
        %820 = vmatpush1.bf16.xpose.msra.mxu0 0
        %821 = vmatprep.subr.bf16.mxu0 0
        %822 = vmatpush1.bf16.xpose.msra.mxu0 0
        %823 = vmatprep.subr.bf16.mxu0 0
        %824 = vmatpush1.bf16.xpose.msra.mxu0 0
        %825 = vmatprep.subr.bf16.mxu0 0
        %826 = vmatpush1.bf16.xpose.msra.mxu0 0
        %827 = vmatprep.subr.bf16.mxu0 0
        %828 = vmatpush1.bf16.xpose.msra.mxu0 0
        %829 = vmatprep.subr.bf16.mxu0 0
        %830 = vmatpush1.bf16.xpose.msra.mxu0 0
        %831 = vmatprep.subr.bf16.mxu0 0
        %832 = vmatpush1.bf16.xpose.msra.mxu0 0
        %833 = vmatprep.subr.bf16.mxu0 0
        %834 = vmatpush1.bf16.xpose.msra.mxu0 0
        %835 = vmatprep.subr.bf16.mxu0 0
        %836 = vmatpush1.bf16.xpose.msra.mxu0 0
        %837 = vmatprep.mubr.bf16.mxu0 0
        %838 = vmatmul.mubr.bf16.gmra.mrb[0].mxu0 %v800
        %v839 = vpop.f32.mrb[0].mxu0
        %v840 = vadd.f32 0.0, %v839
        %v841 = vpop.f32.mrb[0].mxu0
        %v842 = vpop.f32.mrb[0].mxu0
        %v843 = vpop.f32.mrb[0].mxu0
        %844 = vdwg.mxu0
        %v845 = vmul.f32 %v840, 0.35355338
        %v847 = vlaneseq
        %v848 = vshrl.u32 %v847, 7
        %v849 = vsub.s32 0, %v848
        %v850 = vrot.slane %v797, %v849
        %v852 = vadd.f32 %v845, %v850
        %v853 = vsel %vm798, %v852, -inf
        %854 = vmax.xlane.f32.xlu0 %v853
        %v855 = vpop.xlane.xlu0 %854
        %v856 = vsub.f32 %v852, %v855
        %v857 = vmul.f32 %v856, 1.442695
        %v858 = vpow.pop %v857
        %v859 = vsel %vm798, %v858, 0.0
        %860 = vadd.xlane.f32.xlu0 %v859
        %v861 = vpop.xlane.xlu0 %860
        %v862 = vpack.c.bf16 %v858, %v858
        %v864 = vsel %vm798, %v862, 0
        %vm866 = vcmask 1043456
        %v868 = vsel %vm866, %v794, 0
        %870 = vmatprep.subr.bf16.mxu0 0
        %871 = vmatpush1.bf16.msra.mxu0 %v868
        %872 = vmatprep.subr.bf16.mxu0 0
        %873 = vmatpush1.bf16.msra.mxu0 0
        %874 = vmatprep.subr.bf16.mxu0 0
        %875 = vmatpush1.bf16.msra.mxu0 0
        %876 = vmatprep.subr.bf16.mxu0 0
        %877 = vmatpush1.bf16.msra.mxu0 0
        %878 = vmatprep.subr.bf16.mxu0 0
        %879 = vmatpush1.bf16.msra.mxu0 0
        %880 = vmatprep.subr.bf16.mxu0 0
        %881 = vmatpush1.bf16.msra.mxu0 0
        %882 = vmatprep.subr.bf16.mxu0 0
        %883 = vmatpush1.bf16.msra.mxu0 0
        %884 = vmatprep.subr.bf16.mxu0 0
        %885 = vmatpush1.bf16.msra.mxu0 0
        %886 = vmatprep.subr.bf16.mxu0 0
        %887 = vmatpush1.bf16.msra.mxu0 0
        %888 = vmatprep.subr.bf16.mxu0 0
        %889 = vmatpush1.bf16.msra.mxu0 0
        %890 = vmatprep.subr.bf16.mxu0 0
        %891 = vmatpush1.bf16.msra.mxu0 0
        %892 = vmatprep.subr.bf16.mxu0 0
        %893 = vmatpush1.bf16.msra.mxu0 0
        %894 = vmatprep.subr.bf16.mxu0 0
        %895 = vmatpush1.bf16.msra.mxu0 0
        %896 = vmatprep.subr.bf16.mxu0 0
        %897 = vmatpush1.bf16.msra.mxu0 0
        %898 = vmatprep.subr.bf16.mxu0 0
        %899 = vmatpush1.bf16.msra.mxu0 0
        %900 = vmatprep.subr.bf16.mxu0 0
        %901 = vmatpush1.bf16.msra.mxu0 0
        %902 = vmatprep.mubr.bf16.mxu0 0
        %903 = vmatmul.mubr.bf16.gmra.mrb[0].mxu0 %v864
        %v904 = vpop.f32.mrb[0].mxu0
        %v905 = vadd.f32 0.0, %v904
        %v906 = vpop.f32.mrb[0].mxu0
        %v907 = vpop.f32.mrb[0].mxu0
        %v908 = vpop.f32.mrb[0].mxu0
        %909 = vdwg.mxu0
        %v910 = vrcp.pop %v861
        %v911 = vmul.f32 %v905, %v910
        %912 = vst.msk [vmem:[#allocation2] sm:$0xff] %vm798, %v911
        %914 = vrot.lane.b32.xlu0 %v666, 120
        %v915 = vpop.permute.xlu0 %914
        %917 = vrot.lane.b32.xlu0 %v730, 120
        %v918 = vpop.permute.xlu0 %917
        %v920 = vsel %vm798, %v915, 0
        %v923 = vsel %vm798, %v918, 0
        %925 = vmatprep.subr.bf16.mxu0 0
        %926 = vmatpush1.bf16.xpose.msra.mxu0 %v923
        %927 = vmatprep.subr.bf16.mxu0 0
        %928 = vmatpush1.bf16.xpose.msra.mxu0 0
        %929 = vmatprep.subr.bf16.mxu0 0
        %930 = vmatpush1.bf16.xpose.msra.mxu0 0
        %931 = vmatprep.subr.bf16.mxu0 0
        %932 = vmatpush1.bf16.xpose.msra.mxu0 0
        %933 = vmatprep.subr.bf16.mxu0 0
        %934 = vmatpush1.bf16.xpose.msra.mxu0 0
        %935 = vmatprep.subr.bf16.mxu0 0
        %936 = vmatpush1.bf16.xpose.msra.mxu0 0
        %937 = vmatprep.subr.bf16.mxu0 0
        %938 = vmatpush1.bf16.xpose.msra.mxu0 0
        %939 = vmatprep.subr.bf16.mxu0 0
        %940 = vmatpush1.bf16.xpose.msra.mxu0 0
        %941 = vmatprep.subr.bf16.mxu0 0
        %942 = vmatpush1.bf16.xpose.msra.mxu0 0
        %943 = vmatprep.subr.bf16.mxu0 0
        %944 = vmatpush1.bf16.xpose.msra.mxu0 0
        %945 = vmatprep.subr.bf16.mxu0 0
        %946 = vmatpush1.bf16.xpose.msra.mxu0 0
        %947 = vmatprep.subr.bf16.mxu0 0
        %948 = vmatpush1.bf16.xpose.msra.mxu0 0
        %949 = vmatprep.subr.bf16.mxu0 0
        %950 = vmatpush1.bf16.xpose.msra.mxu0 0
        %951 = vmatprep.subr.bf16.mxu0 0
        %952 = vmatpush1.bf16.xpose.msra.mxu0 0
        %953 = vmatprep.subr.bf16.mxu0 0
        %954 = vmatpush1.bf16.xpose.msra.mxu0 0
        %955 = vmatprep.subr.bf16.mxu0 0
        %956 = vmatpush1.bf16.xpose.msra.mxu0 0
        %957 = vmatprep.mubr.bf16.mxu0 0
        %958 = vmatmul.mubr.bf16.gmra.mrb[0].mxu0 %v920
        %v959 = vpop.f32.mrb[0].mxu0
        %v960 = vadd.f32 0.0, %v959
        %v961 = vpop.f32.mrb[0].mxu0
        %v962 = vpop.f32.mrb[0].mxu0
        %v963 = vpop.f32.mrb[0].mxu0
        %964 = vdwg.mxu0
        %v965 = vmul.f32 %v960, 0.35355338
        %v966 = vadd.f32 %v965, %v850
        %v967 = vsel %vm798, %v966, -inf
        %968 = vmax.xlane.f32.xlu0 %v967
        %v969 = vpop.xlane.xlu0 %968
        %v970 = vsub.f32 %v966, %v969
        %v971 = vmul.f32 %v970, 1.442695
        %v972 = vpow.pop %v971
        %v973 = vsel %vm798, %v972, 0.0
        %974 = vadd.xlane.f32.xlu0 %v973
        %v975 = vpop.xlane.xlu0 %974
        %v976 = vpack.c.bf16 %v972, %v972
        %978 = vrot.lane.b32.xlu0 %v794, 120
        %v979 = vpop.permute.xlu0 %978
        %v981 = vsel %vm798, %v976, 0
        %v984 = vsel %vm866, %v979, 0
        %986 = vmatprep.subr.bf16.mxu0 0
        %987 = vmatpush1.bf16.msra.mxu0 %v984
        %988 = vmatprep.subr.bf16.mxu0 0
        %989 = vmatpush1.bf16.msra.mxu0 0
        %990 = vmatprep.subr.bf16.mxu0 0
        %991 = vmatpush1.bf16.msra.mxu0 0
        %992 = vmatprep.subr.bf16.mxu0 0
        %993 = vmatpush1.bf16.msra.mxu0 0
        %994 = vmatprep.subr.bf16.mxu0 0
        %995 = vmatpush1.bf16.msra.mxu0 0
        %996 = vmatprep.subr.bf16.mxu0 0
        %997 = vmatpush1.bf16.msra.mxu0 0
        %998 = vmatprep.subr.bf16.mxu0 0
        %999 = vmatpush1.bf16.msra.mxu0 0
        %1000 = vmatprep.subr.bf16.mxu0 0
        %1001 = vmatpush1.bf16.msra.mxu0 0
        %1002 = vmatprep.subr.bf16.mxu0 0
        %1003 = vmatpush1.bf16.msra.mxu0 0
        %1004 = vmatprep.subr.bf16.mxu0 0
        %1005 = vmatpush1.bf16.msra.mxu0 0
        %1006 = vmatprep.subr.bf16.mxu0 0
        %1007 = vmatpush1.bf16.msra.mxu0 0
        %1008 = vmatprep.subr.bf16.mxu0 0
        %1009 = vmatpush1.bf16.msra.mxu0 0
        %1010 = vmatprep.subr.bf16.mxu0 0
        %1011 = vmatpush1.bf16.msra.mxu0 0
        %1012 = vmatprep.subr.bf16.mxu0 0
        %1013 = vmatpush1.bf16.msra.mxu0 0
        %1014 = vmatprep.subr.bf16.mxu0 0
        %1015 = vmatpush1.bf16.msra.mxu0 0
        %1016 = vmatprep.subr.bf16.mxu0 0
        %1017 = vmatpush1.bf16.msra.mxu0 0
        %1018 = vmatprep.mubr.bf16.mxu0 0
        %1019 = vmatmul.mubr.bf16.gmra.mrb[0].mxu0 %v981
        %v1020 = vpop.f32.mrb[0].mxu0
        %v1021 = vadd.f32 0.0, %v1020
        %v1022 = vpop.f32.mrb[0].mxu0
        %v1023 = vpop.f32.mrb[0].mxu0
        %v1024 = vpop.f32.mrb[0].mxu0
        %1025 = vdwg.mxu0
        %v1026 = vrcp.pop %v975
        %v1027 = vmul.f32 %v1021, %v1026
        %1029 = vrot.lane.b32.xlu0 %v1027, 8
        %v1030 = vpop.permute.xlu0 %1029
        %vm1032 = vcmask 130112
        %1033 = vst.msk [vmem:[#allocation2] sm:$0xff] %vm1032, %v1030
        %1034 = vrot.lane.b32.xlu0 %v666, 112
        %v1035 = vpop.permute.xlu0 %1034
        %1036 = vrot.lane.b32.xlu0 %v730, 112
        %v1037 = vpop.permute.xlu0 %1036
        %v1039 = vsel %vm798, %v1035, 0
        %v1042 = vsel %vm798, %v1037, 0
        %1044 = vmatprep.subr.bf16.mxu0 0
        %1045 = vmatpush1.bf16.xpose.msra.mxu0 %v1042
        %1046 = vmatprep.subr.bf16.mxu0 0
        %1047 = vmatpush1.bf16.xpose.msra.mxu0 0
        %1048 = vmatprep.subr.bf16.mxu0 0
        %1049 = vmatpush1.bf16.xpose.msra.mxu0 0
        %1050 = vmatprep.subr.bf16.mxu0 0
        %1051 = vmatpush1.bf16.xpose.msra.mxu0 0
        %1052 = vmatprep.subr.bf16.mxu0 0
        %1053 = vmatpush1.bf16.xpose.msra.mxu0 0
        %1054 = vmatprep.subr.bf16.mxu0 0
        %1055 = vmatpush1.bf16.xpose.msra.mxu0 0
        %1056 = vmatprep.subr.bf16.mxu0 0
        %1057 = vmatpush1.bf16.xpose.msra.mxu0 0
        %1058 = vmatprep.subr.bf16.mxu0 0
        %1059 = vmatpush1.bf16.xpose.msra.mxu0 0
        %1060 = vmatprep.subr.bf16.mxu0 0
        %1061 = vmatpush1.bf16.xpose.msra.mxu0 0
        %1062 = vmatprep.subr.bf16.mxu0 0
        %1063 = vmatpush1.bf16.xpose.msra.mxu0 0
        %1064 = vmatprep.subr.bf16.mxu0 0
        %1065 = vmatpush1.bf16.xpose.msra.mxu0 0
        %1066 = vmatprep.subr.bf16.mxu0 0
        %1067 = vmatpush1.bf16.xpose.msra.mxu0 0
        %1068 = vmatprep.subr.bf16.mxu0 0
        %1069 = vmatpush1.bf16.xpose.msra.mxu0 0
        %1070 = vmatprep.subr.bf16.mxu0 0
        %1071 = vmatpush1.bf16.xpose.msra.mxu0 0
        %1072 = vmatprep.subr.bf16.mxu0 0
        %1073 = vmatpush1.bf16.xpose.msra.mxu0 0
        %1074 = vmatprep.subr.bf16.mxu0 0
        %1075 = vmatpush1.bf16.xpose.msra.mxu0 0
        %1076 = vmatprep.mubr.bf16.mxu0 0
        %1077 = vmatmul.mubr.bf16.gmra.mrb[0].mxu0 %v1039
        %v1078 = vpop.f32.mrb[0].mxu0
        %v1079 = vadd.f32 0.0, %v1078
        %v1080 = vpop.f32.mrb[0].mxu0
        %v1081 = vpop.f32.mrb[0].mxu0
        %v1082 = vpop.f32.mrb[0].mxu0
        %1083 = vdwg.mxu0
        %v1084 = vmul.f32 %v1079, 0.35355338
        %v1085 = vadd.f32 %v1084, %v850
        %v1086 = vsel %vm798, %v1085, -inf
        %1087 = vmax.xlane.f32.xlu0 %v1086
        %v1088 = vpop.xlane.xlu0 %1087
        %v1089 = vsub.f32 %v1085, %v1088
        %v1090 = vmul.f32 %v1089, 1.442695
        %v1091 = vpow.pop %v1090
        %v1092 = vsel %vm798, %v1091, 0.0
        %1093 = vadd.xlane.f32.xlu0 %v1092
        %v1094 = vpop.xlane.xlu0 %1093
        %v1095 = vpack.c.bf16 %v1091, %v1091
        %1096 = vrot.lane.b32.xlu0 %v794, 112
        %v1097 = vpop.permute.xlu0 %1096
        %v1099 = vsel %vm798, %v1095, 0
        %v1102 = vsel %vm866, %v1097, 0
        %1104 = vmatprep.subr.bf16.mxu0 0
        %1105 = vmatpush1.bf16.msra.mxu0 %v1102
        %1106 = vmatprep.subr.bf16.mxu0 0
        %1107 = vmatpush1.bf16.msra.mxu0 0
        %1108 = vmatprep.subr.bf16.mxu0 0
        %1109 = vmatpush1.bf16.msra.mxu0 0
        %1110 = vmatprep.subr.bf16.mxu0 0
        %1111 = vmatpush1.bf16.msra.mxu0 0
        %1112 = vmatprep.subr.bf16.mxu0 0
        %1113 = vmatpush1.bf16.msra.mxu0 0
        %1114 = vmatprep.subr.bf16.mxu0 0
        %1115 = vmatpush1.bf16.msra.mxu0 0
        %1116 = vmatprep.subr.bf16.mxu0 0
        %1117 = vmatpush1.bf16.msra.mxu0 0
        %1118 = vmatprep.subr.bf16.mxu0 0
        %1119 = vmatpush1.bf16.msra.mxu0 0
        %1120 = vmatprep.subr.bf16.mxu0 0
        %1121 = vmatpush1.bf16.msra.mxu0 0
        %1122 = vmatprep.subr.bf16.mxu0 0
        %1123 = vmatpush1.bf16.msra.mxu0 0
        %1124 = vmatprep.subr.bf16.mxu0 0
        %1125 = vmatpush1.bf16.msra.mxu0 0
        %1126 = vmatprep.subr.bf16.mxu0 0
        %1127 = vmatpush1.bf16.msra.mxu0 0
        %1128 = vmatprep.subr.bf16.mxu0 0
        %1129 = vmatpush1.bf16.msra.mxu0 0
        %1130 = vmatprep.subr.bf16.mxu0 0
        %1131 = vmatpush1.bf16.msra.mxu0 0
        %1132 = vmatprep.subr.bf16.mxu0 0
        %1133 = vmatpush1.bf16.msra.mxu0 0
        %1134 = vmatprep.subr.bf16.mxu0 0
        %1135 = vmatpush1.bf16.msra.mxu0 0
        %1136 = vmatprep.mubr.bf16.mxu0 0
        %1137 = vmatmul.mubr.bf16.gmra.mrb[0].mxu0 %v1099
        %v1138 = vpop.f32.mrb[0].mxu0
        %v1139 = vadd.f32 0.0, %v1138
        %v1140 = vpop.f32.mrb[0].mxu0
        %v1141 = vpop.f32.mrb[0].mxu0
        %v1142 = vpop.f32.mrb[0].mxu0
        %1143 = vdwg.mxu0
        %v1144 = vrcp.pop %v1094
        %v1145 = vmul.f32 %v1139, %v1144
        %1147 = vrot.lane.b32.xlu0 %v1145, 16
        %v1148 = vpop.permute.xlu0 %1147
        %vm1150 = vcmask 195712
        %1151 = vst.msk [vmem:[#allocation2] sm:$0xff] %vm1150, %v1148
        %1152 = vrot.lane.b32.xlu0 %v666, 104
        %v1153 = vpop.permute.xlu0 %1152
        %1154 = vrot.lane.b32.xlu0 %v730, 104
        %v1155 = vpop.permute.xlu0 %1154
        %v1157 = vsel %vm798, %v1153, 0
        %v1160 = vsel %vm798, %v1155, 0
        %1162 = vmatprep.subr.bf16.mxu0 0
        %1163 = vmatpush1.bf16.xpose.msra.mxu0 %v1160
        %1164 = vmatprep.subr.bf16.mxu0 0
        %1165 = vmatpush1.bf16.xpose.msra.mxu0 0
        %1166 = vmatprep.subr.bf16.mxu0 0
        %1167 = vmatpush1.bf16.xpose.msra.mxu0 0
        %1168 = vmatprep.subr.bf16.mxu0 0
        %1169 = vmatpush1.bf16.xpose.msra.mxu0 0
        %1170 = vmatprep.subr.bf16.mxu0 0
        %1171 = vmatpush1.bf16.xpose.msra.mxu0 0
        %1172 = vmatprep.subr.bf16.mxu0 0
        %1173 = vmatpush1.bf16.xpose.msra.mxu0 0
        %1174 = vmatprep.subr.bf16.mxu0 0
        %1175 = vmatpush1.bf16.xpose.msra.mxu0 0
        %1176 = vmatprep.subr.bf16.mxu0 0
        %1177 = vmatpush1.bf16.xpose.msra.mxu0 0
        %1178 = vmatprep.subr.bf16.mxu0 0
        %1179 = vmatpush1.bf16.xpose.msra.mxu0 0
        %1180 = vmatprep.subr.bf16.mxu0 0
        %1181 = vmatpush1.bf16.xpose.msra.mxu0 0
        %1182 = vmatprep.subr.bf16.mxu0 0
        %1183 = vmatpush1.bf16.xpose.msra.mxu0 0
        %1184 = vmatprep.subr.bf16.mxu0 0
        %1185 = vmatpush1.bf16.xpose.msra.mxu0 0
        %1186 = vmatprep.subr.bf16.mxu0 0
        %1187 = vmatpush1.bf16.xpose.msra.mxu0 0
        %1188 = vmatprep.subr.bf16.mxu0 0
        %1189 = vmatpush1.bf16.xpose.msra.mxu0 0
        %1190 = vmatprep.subr.bf16.mxu0 0
        %1191 = vmatpush1.bf16.xpose.msra.mxu0 0
        %1192 = vmatprep.subr.bf16.mxu0 0
        %1193 = vmatpush1.bf16.xpose.msra.mxu0 0
        %1194 = vmatprep.mubr.bf16.mxu0 0
        %1195 = vmatmul.mubr.bf16.gmra.mrb[0].mxu0 %v1157
        %v1196 = vpop.f32.mrb[0].mxu0
        %v1197 = vadd.f32 0.0, %v1196
        %v1198 = vpop.f32.mrb[0].mxu0
        %v1199 = vpop.f32.mrb[0].mxu0
        %v1200 = vpop.f32.mrb[0].mxu0
        %1201 = vdwg.mxu0
        %v1202 = vmul.f32 %v1197, 0.35355338
        %v1203 = vadd.f32 %v1202, %v850
        %v1204 = vsel %vm798, %v1203, -inf
        %1205 = vmax.xlane.f32.xlu0 %v1204
        %v1206 = vpop.xlane.xlu0 %1205
        %v1207 = vsub.f32 %v1203, %v1206
        %v1208 = vmul.f32 %v1207, 1.442695
        %v1209 = vpow.pop %v1208
        %v1210 = vsel %vm798, %v1209, 0.0
        %1211 = vadd.xlane.f32.xlu0 %v1210
        %v1212 = vpop.xlane.xlu0 %1211
        %v1213 = vpack.c.bf16 %v1209, %v1209
        %1214 = vrot.lane.b32.xlu0 %v794, 104
        %v1215 = vpop.permute.xlu0 %1214
        %v1217 = vsel %vm798, %v1213, 0
        %v1220 = vsel %vm866, %v1215, 0
        %1222 = vmatprep.subr.bf16.mxu0 0
        %1223 = vmatpush1.bf16.msra.mxu0 %v1220
        %1224 = vmatprep.subr.bf16.mxu0 0
        %1225 = vmatpush1.bf16.msra.mxu0 0
        %1226 = vmatprep.subr.bf16.mxu0 0
        %1227 = vmatpush1.bf16.msra.mxu0 0
        %1228 = vmatprep.subr.bf16.mxu0 0
        %1229 = vmatpush1.bf16.msra.mxu0 0
        %1230 = vmatprep.subr.bf16.mxu0 0
        %1231 = vmatpush1.bf16.msra.mxu0 0
        %1232 = vmatprep.subr.bf16.mxu0 0
        %1233 = vmatpush1.bf16.msra.mxu0 0
        %1234 = vmatprep.subr.bf16.mxu0 0
        %1235 = vmatpush1.bf16.msra.mxu0 0
        %1236 = vmatprep.subr.bf16.mxu0 0
        %1237 = vmatpush1.bf16.msra.mxu0 0
        %1238 = vmatprep.subr.bf16.mxu0 0
        %1239 = vmatpush1.bf16.msra.mxu0 0
        %1240 = vmatprep.subr.bf16.mxu0 0
        %1241 = vmatpush1.bf16.msra.mxu0 0
        %1242 = vmatprep.subr.bf16.mxu0 0
        %1243 = vmatpush1.bf16.msra.mxu0 0
        %1244 = vmatprep.subr.bf16.mxu0 0
        %1245 = vmatpush1.bf16.msra.mxu0 0
        %1246 = vmatprep.subr.bf16.mxu0 0
        %1247 = vmatpush1.bf16.msra.mxu0 0
        %1248 = vmatprep.subr.bf16.mxu0 0
        %1249 = vmatpush1.bf16.msra.mxu0 0
        %1250 = vmatprep.subr.bf16.mxu0 0
        %1251 = vmatpush1.bf16.msra.mxu0 0
        %1252 = vmatprep.subr.bf16.mxu0 0
        %1253 = vmatpush1.bf16.msra.mxu0 0
        %1254 = vmatprep.mubr.bf16.mxu0 0
        %1255 = vmatmul.mubr.bf16.gmra.mrb[0].mxu0 %v1217
        %v1256 = vpop.f32.mrb[0].mxu0
        %v1257 = vadd.f32 0.0, %v1256
        %v1258 = vpop.f32.mrb[0].mxu0
        %v1259 = vpop.f32.mrb[0].mxu0
        %v1260 = vpop.f32.mrb[0].mxu0
        %1261 = vdwg.mxu0
        %v1262 = vrcp.pop %v1212
        %v1263 = vmul.f32 %v1257, %v1262
        %1265 = vrot.lane.b32.xlu0 %v1263, 24
        %v1266 = vpop.permute.xlu0 %1265
        %vm1268 = vcmask 261312
        %1269 = vst.msk [vmem:[#allocation2] sm:$0xff] %vm1268, %v1266
        %v1270 = vld [vmem:[#allocation2] sm:$0xff]
        %v1271 = vpack.c.bf16 %v1270, %v1270
        %v1272 = vld [vmem:[#allocation17] sm:$0xf]
        %v1273 = vld [vmem:[#allocation17 + $0x4] sm:$0xf]
        %v1274 = vld [vmem:[#allocation17 + $0x8] sm:$0xf]
        %v1275 = vld [vmem:[#allocation17 + $0xc] sm:$0xf]
        %v1276 = vld [vmem:[#allocation18] sm:$0x1]
        %v1278 = vlaneseq
        %v1279 = vshrl.u32 %v1278, 7
        %v1280 = vsub.s32 0, %v1279
        %v1281 = vrot.slane %v1276, %v1280
        %v1287 = vunpack.c.l.b16 %v1272
        %v1288 = vunpack.c.l.b16 %v1273
        %v1289 = vunpack.c.l.b16 %v1274
        %v1290 = vunpack.c.l.b16 %v1275
        %v1291 = vpack.c.b16 %v1288, %v1287
        %v1292 = vpack.c.b16 %v1290, %v1289
        %v1296 = vsel %vm622, %v1271, 0
        %1298 = vmatprep.subr.bf16.mxu0 0
        %1299 = vmatpush1.bf16.msra.mxu0 %v1291
        %1300 = vmatprep.subr.bf16.mxu0 0
        %1301 = vmatpush1.bf16.msra.mxu0 %v1292
        %1302 = vmatprep.subr.bf16.mxu0 0
        %1303 = vmatpush1.bf16.msra.mxu0 0
        %1304 = vmatprep.subr.bf16.mxu0 0
        %1305 = vmatpush1.bf16.msra.mxu0 0
        %1306 = vmatprep.subr.bf16.mxu0 0
        %1307 = vmatpush1.bf16.msra.mxu0 0
        %1308 = vmatprep.subr.bf16.mxu0 0
        %1309 = vmatpush1.bf16.msra.mxu0 0
        %1310 = vmatprep.subr.bf16.mxu0 0
        %1311 = vmatpush1.bf16.msra.mxu0 0
        %1312 = vmatprep.subr.bf16.mxu0 0
        %1313 = vmatpush1.bf16.msra.mxu0 0
        %1314 = vmatprep.subr.bf16.mxu0 0
        %1315 = vmatpush1.bf16.msra.mxu0 0
        %1316 = vmatprep.subr.bf16.mxu0 0
        %1317 = vmatpush1.bf16.msra.mxu0 0
        %1318 = vmatprep.subr.bf16.mxu0 0
        %1319 = vmatpush1.bf16.msra.mxu0 0
        %1320 = vmatprep.subr.bf16.mxu0 0
        %1321 = vmatpush1.bf16.msra.mxu0 0
        %1322 = vmatprep.subr.bf16.mxu0 0
        %1323 = vmatpush1.bf16.msra.mxu0 0
        %1324 = vmatprep.subr.bf16.mxu0 0
        %1325 = vmatpush1.bf16.msra.mxu0 0
        %1326 = vmatprep.subr.bf16.mxu0 0
        %1327 = vmatpush1.bf16.msra.mxu0 0
        %1328 = vmatprep.subr.bf16.mxu0 0
        %1329 = vmatpush1.bf16.msra.mxu0 0
        %1330 = vmatprep.mubr.bf16.mxu0 0
        %1331 = vmatmul.mubr.bf16.gmra.mrb[0].mxu0 %v1296
        %v1332 = vpop.f32.mrb[0].mxu0
        %v1333 = vadd.f32 %v1281, %v1332
        %v1334 = vpop.f32.mrb[0].mxu0
        %v1335 = vpop.f32.mrb[0].mxu0
        %v1336 = vpop.f32.mrb[0].mxu0
        %1337 = vdwg.mxu0
        %v1338 = vadd.f32 %v1333, %v597
        %v1339 = vsel %vm622, %v1338, 0.0
        %1340 = vadd.xlane.f32.xlu0 %v1339
        %v1341 = vpop.xlane.xlu0 %1340
        %v1342 = vrcp.pop 32.0
        %v1343 = vmul.f32 %v1341, %v1342
        %v1344 = vsub.f32 %v1338, %v1343
        %v1345 = vmul.f32 %v1344, %v1344
        %v1346 = vsel %vm622, %v1345, 0.0
        %1347 = vadd.xlane.f32.xlu0 %v1346
        %v1348 = vpop.xlane.xlu0 %1347
        %v1349 = vmul.f32 %v1348, %v1342
        %v1350 = vadd.f32 %v1349, 1e-12
        %v1351 = vrsqrt.pop %v1350
        %v1352 = vmul.f32 %v1344, %v1351
        %v1353 = vld [vmem:[#allocation20] sm:$0x1]
        %v1355 = vlaneseq
        %v1356 = vshrl.u32 %v1355, 7
        %v1357 = vsub.s32 0, %v1356
        %v1358 = vrot.slane %v1353, %v1357
        %v1360 = vmul.f32 %v1352, %v1358
        %v1361 = vld [vmem:[#allocation21] sm:$0x1]
        %v1363 = vlaneseq
        %v1364 = vshrl.u32 %v1363, 7
        %v1365 = vsub.s32 0, %v1364
        %v1366 = vrot.slane %v1361, %v1365
        %v1368 = vadd.f32 %v1360, %v1366
        %1369 = vst.msk [vmem:[%s595] sm:$0xff] %vm622, %v1368
        %s1370 = sand.u32 %s307, 1
        %s1371 = scalar_lea.sflag [#allocation5], %s1370
        %s1372 = sand.u32 %s307, 1
        %s1373 = smul.addr %s1372, 8
        %s1374 = scalar_lea.vmem [#allocation23], %s1373
        // Predicated region
        $region117: #{tpu_custom_call.1} parent=67 // pred_check
          %p1375 = pneg %p317
        $region118: #{tpu_custom_call.1} parent=67 // pred_check_branch
          %1377 = sbr.rel (%p1375) target = $region120
        $region119: #{tpu_custom_call.1} parent=67 // pred_region
          %s1379 = ssub.s32 128, 128
          %1380 = vsyncadd %s1371, %s1379
          %s1381 = smul.addr %s37, 128
          %s1382 = scalar_lea.hbm %s12, %s1381
          %s1384 = sshll.u32 %s1374, 4
          %s1385 = int_to_ptr.vmem [resolvable:$true] %s1384
          %1387 = dma.vmem_to_hbm [thread:$0]  %s1385, 128, %s1382, %s1371
        $region120: #{tpu_custom_call.1} parent=67 // pred_fallthru
          _
      $region68: #{tpu_custom_call.1} parent=5 // pred_fallthru
        _
      %p1388 = scmp.le.s32.totalorder 2, %s32
      // Predicated region
      $region121: #{tpu_custom_call.1} parent=5 // pred_check
        %p1389 = pneg %p1388
      $region122: #{tpu_custom_call.1} parent=5 // pred_check_branch
        %1391 = sbr.rel (%p1389) target = $region124
      $region123: #{tpu_custom_call.1} parent=5 // pred_region
        %s1392 = ssub.s32 %s32, 2
        // Predicated region
        $region125: #{tpu_custom_call.1} parent=123 // pred_check
          %p1393 = pneg %p323
        $region126: #{tpu_custom_call.1} parent=123 // pred_check_branch
          %1395 = sbr.rel (%p1393) target = $region128
        $region127: #{tpu_custom_call.1} parent=123 // pred_region
          %s1396 = sand.u32 %s308, 1
          %s1397 = scalar_lea.sflag [#allocation5], %s1396
          %s1398 = sand.u32 %s308, 1
          %s1399 = smul.addr %s1398, 8
          %s1400 = scalar_lea.vmem [#allocation23], %s1399
          %1401 = dma.done %s1397, 128
        $region128: #{tpu_custom_call.1} parent=123 // pred_fallthru
          _
      $region124: #{tpu_custom_call.1} parent=5 // pred_fallthru
        _
    $region6: #{tpu_custom_call.1} parent=1 // loop_footer
      %s36 = sadd.s32 1, %s32
    $region7: #{tpu_custom_call.1} parent=1 // loop_footer_branch
      %31 = sbr.rel target = $region3
    $region8: #{tpu_custom_call.1} parent=1 // loop_exit
      _
    %1402 = vsyncpa [#allocation4], 1
    %s1403 = scalar_lea.sflag [#allocation4], 1
    %1404 = vsyncpa %s1403, 1
    %1405 = vsyncpa [#allocation7], 1
    %s1406 = scalar_lea.sflag [#allocation7], 1
    %1407 = vsyncpa %s1406, 1
    %1408 = vsyncpa [#allocation10], 1
    %1409 = vsyncpa [#allocation13], 1
    %1410 = vsyncpa [#allocation16], 1
    %1411 = vsyncpa [#allocation19], 1
    %1412 = vsyncpa [#allocation22], 1
    %1413 = vsyncpa [#allocation5], 1
    %s1414 = scalar_lea.sflag [#allocation5], 1
    %1415 = vsyncpa %s1414, 1

</llo_original>
